<compile_context>
chip_gen: v5e
topology: v5e:2x2
jax: 0.10.0
libtpu: 0.0.40
codegen_flags: <defaults>
</compile_context>

<pallas_src>
import numpy as np
import jax
import jax.numpy as jnp
from jax.experimental import pallas as pl
from jax.experimental.pallas import tpu as pltpu


def bgru_stack_forward(x, w_ih, w_hh, b_ih, b_hh, *, num_groups=None):
    """BGRUStack.forward (hidden_states=False) as a fused Pallas kernel.

    Args (PyTorch parameter layout):
      x    : (B, C, N, I) float32
      w_ih : (C, 2, 3H, I)   weight_ih_l0 / weight_ih_l0_reverse per stack
      w_hh : (C, 2, 3H, H)
      b_ih : (C, 2, 3H)
      b_hh : (C, 2, 3H)
    Returns:
      (B, N, C, 2H) float32
    """
    B, C, N, I = x.shape
    H = w_hh.shape[-1]
    f32, bf16 = jnp.float32, jnp.bfloat16

    # grid=(NG,) "parallel" over stack groups: 2 groups (when C is even) keeps
    # both v7x TensorCores busy; on v5e/v6e it is a short sequential loop.
    if num_groups is None:
        num_groups = 2 if (C % 2 == 0) else 1
    NG = num_groups
    assert C % NG == 0, "stack length must divide evenly into groups"
    CG = C // NG            # stacks per group
    CGH = CG * H            # fused hidden width per direction
    G3 = 3 * CGH            # fused gate width per direction: [r | z | n]

    # ---- inputs: (B,C,N,I) -> (NG, N*B, CG*I); rows ordered (t, b), cols (c, i).
    # No duplicated time-reversed copy (backward gates are indexed at N-1-t
    # inside the kernel with static slices).
    xt = jnp.transpose(x, (1, 2, 0, 3))                        # (C, N, B, I)
    xg = xt.reshape(NG, CG, N, B, I)
    xg = jnp.transpose(xg, (0, 2, 3, 1, 4))                    # (NG, N, B, CG, I)
    x_in = xg.reshape(NG, N * B, CG * I).astype(bf16)

    # ---- weights: block-diagonal over the stacks of a group; gate-major
    # columns [r | z | n], each CG*H wide, stack-local offset c*H inside.
    eye_cg = jnp.eye(CG, dtype=f32)

    def pack_wih(d):                                           # (NG, CG*I, 3*CG*H)
        wt = jnp.swapaxes(w_ih[:, d], -1, -2)                  # (C, I, 3H)
        wt = wt.reshape(NG, CG, I, 3, H)                       # (g, c, i, gate, h)
        blk = wt[:, :, :, :, None, :] * eye_cg[None, :, None, None, :, None]
        return blk.reshape(NG, CG * I, G3).astype(bf16)

    def pack_whh(d):                                           # (NG, CG*H, 3*CG*H)
        wt = jnp.swapaxes(w_hh[:, d], -1, -2)                  # (C, H, 3H)
        wt = wt.reshape(NG, CG, H, 3, H)
        blk = wt[:, :, :, :, None, :] * eye_cg[None, :, None, None, :, None]
        return blk.reshape(NG, CGH, G3).astype(bf16)

    def pack_bias(d):
        bi = b_ih[:, d].reshape(C, 3, H)
        bh = b_hh[:, d].reshape(C, 3, H)
        # Fold b_ih (all gates) + b_hh (r,z gates) into the projection bias.
        bg = bi + bh.at[:, 2, :].set(0.0)
        bg = bg.reshape(NG, CG, 3, H)
        bg = jnp.transpose(bg, (0, 2, 1, 3)).reshape(NG, 1, G3).astype(f32)
        # n-gate b_hh stays inside the r * (W_hn h + b_hn) term.
        bn = bh[:, 2, :].reshape(NG, 1, CGH).astype(f32)
        return bg, bn

    wif, wib = pack_wih(0), pack_wih(1)
    whf, whb = pack_whh(0), pack_whh(1)
    bgf, bnf = pack_bias(0)
    bgb, bnb = pack_bias(1)

    def kernel(x_ref, wif_ref, wib_ref, whf_ref, whb_ref,
               bgf_ref, bgb_ref, bnf_ref, bnb_ref,
               out_ref, gxf_ref, gxb_ref):
        """One grid step = one group of CG stacks, both GRU directions fused.

        Block shapes (leading group axis squeezed by the BlockSpecs):
          x_ref       : (N*B, CG*I)    bf16  rows (t, b)
          wif/wib_ref : (CG*I, 3*CG*H) bf16  block-diag over stacks
          whf/whb_ref : (CG*H, 3*CG*H) bf16  block-diag over stacks
          bgf/bgb_ref : (1, 3*CG*H)    f32   folded projection bias
          bnf/bnb_ref : (1, CG*H)      f32   n-gate b_hh
          out_ref     : (N*B, 2*CG*H)  f32   row block t = [h_fwd(t) | h_bwd(N-1-t)]
          gxf/gxb_ref : (N*B, 3*CG*H)  f32   VMEM scratch, per-direction gates
        """
        xb = x_ref[...]
        # Input projection, batched over all stacks of the group and over all
        # timesteps: one dense matmul per direction (no per-c matmuls).
        gxf_ref[...] = (jnp.dot(xb, wif_ref[...],
                                preferred_element_type=jnp.float32)
                        + bgf_ref[...])
        gxb_ref[...] = (jnp.dot(xb, wib_ref[...],
                                preferred_element_type=jnp.float32)
                        + bgb_ref[...])

        whf_m = whf_ref[...]
        whb_m = whb_ref[...]
        # Hoisted broadcasts (JAX does not CSE broadcast_in_dim; keep them out
        # of the unrolled recurrence).
        bnf_b = jnp.broadcast_to(bnf_ref[...], (B, CGH))
        bnb_b = jnp.broadcast_to(bnb_ref[...], (B, CGH))

        h_f = jnp.zeros((B, CGH), jnp.float32)
        h_b = jnp.zeros((B, CGH), jnp.float32)

        # Fully-unrolled static time loop (N is small): every slice below is a
        # static index, so there is no dynamic-slice or relayout cost.
        # TODO(synk): switch to lax.fori_loop with partial unroll for long
        # sequences to keep the live set under the 64-vreg budget.
        for t in range(N):
            gh_f = jnp.dot(h_f.astype(jnp.bfloat16), whf_m,
                           preferred_element_type=jnp.float32)
            gh_b = jnp.dot(h_b.astype(jnp.bfloat16), whb_m,
                           preferred_element_type=jnp.float32)
            gf = gxf_ref[t * B:(t + 1) * B, :]               # fwd gates @ time t
            gb = gxb_ref[(N - 1 - t) * B:(N - t) * B, :]     # bwd gates @ time N-1-t
            # r|z evaluated jointly over the contiguous (128-aligned) leading
            # 2*CG*H lanes, split afterwards.
            rz_f = jax.nn.sigmoid(gf[:, :2 * CGH] + gh_f[:, :2 * CGH])
            rz_b = jax.nn.sigmoid(gb[:, :2 * CGH] + gh_b[:, :2 * CGH])
            n_f = jnp.tanh(gf[:, 2 * CGH:] +
                           rz_f[:, :CGH] * (gh_f[:, 2 * CGH:] + bnf_b))
            n_b = jnp.tanh(gb[:, 2 * CGH:] +
                           rz_b[:, :CGH] * (gh_b[:, 2 * CGH:] + bnb_b))
            h_f = n_f + rz_f[:, CGH:] * (h_f - n_f)          # == (1-z)*n + z*h
            h_b = n_b + rz_b[:, CGH:] * (h_b - n_b)
            # One lane-dense store per step (trailing dim 2*CG*H, a multiple of
            # 128 here) straight into the pipelined output block.
            out_ref[t * B:(t + 1) * B, :] = jnp.concatenate([h_f, h_b], axis=-1)

    out = pl.pallas_call(
        kernel,
        out_shape=jax.ShapeDtypeStruct((NG, N * B, 2 * CGH), f32),
        grid_spec=pltpu.PrefetchScalarGridSpec(
            num_scalar_prefetch=0,
            grid=(NG,),
            in_specs=[
                pl.BlockSpec((None, N * B, CG * I), lambda g: (g, 0, 0)),
                pl.BlockSpec((None, CG * I, G3), lambda g: (g, 0, 0)),
                pl.BlockSpec((None, CG * I, G3), lambda g: (g, 0, 0)),
                pl.BlockSpec((None, CGH, G3), lambda g: (g, 0, 0)),
                pl.BlockSpec((None, CGH, G3), lambda g: (g, 0, 0)),
                pl.BlockSpec((None, 1, G3), lambda g: (g, 0, 0)),
                pl.BlockSpec((None, 1, G3), lambda g: (g, 0, 0)),
                pl.BlockSpec((None, 1, CGH), lambda g: (g, 0, 0)),
                pl.BlockSpec((None, 1, CGH), lambda g: (g, 0, 0)),
            ],
            out_specs=pl.BlockSpec((None, N * B, 2 * CGH), lambda g: (g, 0, 0)),
            scratch_shapes=[
                pltpu.VMEM((N * B, G3), jnp.float32),   # fwd input projection
                pltpu.VMEM((N * B, G3), jnp.float32),   # bwd input projection
            ],
        ),
        compiler_params=pltpu.CompilerParams(
            dimension_semantics=("parallel",),   # group axis -> both v7x TCs
        ),
    )(x_in, wif, wib, whf, whb, bgf, bgb, bnf, bnb)

    # Backward half is stored in step order (= reversed time); un-reverse it
    # with cheap XLA plumbing and re-interleave per stack into PyTorch's
    # (B, N, C, 2H) == torch.stack([...], dim=-2) layout.
    arr = out.reshape(NG, N, B, 2, CG, H)
    out_f = arr[:, :, :, 0]                                   # (NG, N, B, CG, H)
    out_b = jnp.flip(arr[:, :, :, 1], axis=1)                 # (NG, N, B, CG, H)
    res = jnp.concatenate([out_f, out_b], axis=-1)            # (NG, N, B, CG, 2H)
    return jnp.transpose(res, (2, 1, 0, 3, 4)).reshape(B, N, C, 2 * H)


def gru_stack_reference(x, w_ih, w_hh, b_ih, b_hh):
    """Pure-JAX reference of the PyTorch bidirectional GRU stack."""
    B, C, N, I = x.shape
    H = w_hh.shape[-1]
    hp = jax.lax.Precision.HIGHEST
    stack_outs = []
    for c in range(C):
        dir_outs = []
        for d in range(2):
            Wi, Wh = w_ih[c, d], w_hh[c, d]
            bi, bh = b_ih[c, d], b_hh[c, d]
            h = jnp.zeros((B, H), jnp.float32)
            hs = [None] * N
            order = range(N) if d == 0 else range(N - 1, -1, -1)
            for t in order:
                gi = jnp.dot(x[:, c, t, :], Wi.T, precision=hp) + bi
                gh = jnp.dot(h, Wh.T, precision=hp) + bh
                r = jax.nn.sigmoid(gi[:, :H] + gh[:, :H])
                z = jax.nn.sigmoid(gi[:, H:2 * H] + gh[:, H:2 * H])
                n = jnp.tanh(gi[:, 2 * H:] + r * gh[:, 2 * H:])
                h = (1.0 - z) * n + z * h
                hs[t] = h
            dir_outs.append(jnp.stack(hs, axis=1))              # (B, N, H)
        stack_outs.append(jnp.concatenate(dir_outs, axis=-1))   # (B, N, 2H)
    return jnp.stack(stack_outs, axis=2)                        # (B, N, C, 2H)


if __name__ == "__main__":
    # Small shapes consistent with BGRUStack: B x C x N x I, hidden H (=out_chan).
    B, C, N, I, H = 2, 4, 8, 16, 32

    key = jax.random.PRNGKey(0)
    kx, kwi, kwh, kbi, kbh = jax.random.split(key, 5)

    x = jax.random.normal(kx, (B, C, N, I), dtype=jnp.float32)

    # Deterministic init mirroring nn.GRU default: U(-1/sqrt(H), 1/sqrt(H)).
    bound = float(1.0 / np.sqrt(H))
    w_ih = jax.random.uniform(kwi, (C, 2, 3 * H, I), jnp.float32, -bound, bound)
    w_hh = jax.random.uniform(kwh, (C, 2, 3 * H, H), jnp.float32, -bound, bound)
    b_ih = jax.random.uniform(kbi, (C, 2, 3 * H), jnp.float32, -bound, bound)
    b_hh = jax.random.uniform(kbh, (C, 2, 3 * H), jnp.float32, -bound, bound)

    out = bgru_stack_forward(x, w_ih, w_hh, b_ih, b_hh)
    out = jax.block_until_ready(out)
    assert out.shape == (B, N, C, 2 * H), out.shape

    ref = gru_stack_reference(x, w_ih, w_hh, b_ih, b_hh)
    # Tolerance reflects explicit bf16 matmul operands (f32 accumulation) vs
    # the Precision.HIGHEST reference; bf16 rounding of h compounds with N, so
    # re-check this bound if the sequence length is scaled up.
    np.testing.assert_allclose(np.asarray(out), np.asarray(ref),
                               atol=3e-2, rtol=0)
    print("KERNEL_OK")
</pallas_src>

<mosaic_0001>
module attributes {stable_mosaic.version = 11 : i64} {
  func.func @kernel(%arg0: i32, %arg1: memref<1x16x32xbf16, #tpu.memory_space<vmem>>, %arg2: memref<1x32x192xbf16, #tpu.memory_space<vmem>>, %arg3: memref<1x32x192xbf16, #tpu.memory_space<vmem>>, %arg4: memref<1x64x192xbf16, #tpu.memory_space<vmem>>, %arg5: memref<1x64x192xbf16, #tpu.memory_space<vmem>>, %arg6: memref<1x1x192xf32, #tpu.memory_space<vmem>>, %arg7: memref<1x1x192xf32, #tpu.memory_space<vmem>>, %arg8: memref<1x1x64xf32, #tpu.memory_space<vmem>>, %arg9: memref<1x1x64xf32, #tpu.memory_space<vmem>>, %arg10: memref<1x16x128xf32, #tpu.memory_space<vmem>>, %arg11: memref<16x192xf32, #tpu.memory_space<vmem>>, %arg12: memref<16x192xf32, #tpu.memory_space<vmem>>) attributes {dimension_semantics = [#tpu.dimension_semantics<parallel>], iteration_bounds = array<i64: 2>, scalar_prefetch = 0 : i64, scratch_operands = 2 : i64, tpu.core_type = #tpu.core_type<tc>, window_params = [{transform_indices = @transform_0, window_bounds = array<i64: 1, 16, 32>}, {transform_indices = @transform_1, window_bounds = array<i64: 1, 32, 192>}, {transform_indices = @transform_2, window_bounds = array<i64: 1, 32, 192>}, {transform_indices = @transform_3, window_bounds = array<i64: 1, 64, 192>}, {transform_indices = @transform_4, window_bounds = array<i64: 1, 64, 192>}, {transform_indices = @transform_5, window_bounds = array<i64: 1, 1, 192>}, {transform_indices = @transform_6, window_bounds = array<i64: 1, 1, 192>}, {transform_indices = @transform_7, window_bounds = array<i64: 1, 1, 64>}, {transform_indices = @transform_8, window_bounds = array<i64: 1, 1, 64>}, {transform_indices = @transform_9, window_bounds = array<i64: 1, 16, 128>}]} {
    %c0 = arith.constant 0 : index
    %c0_0 = arith.constant 0 : index
    %c0_1 = arith.constant 0 : index
    %0 = vector.load %arg1[%c0, %c0_0, %c0_1] : memref<1x16x32xbf16, #tpu.memory_space<vmem>>, vector<1x16x32xbf16>
    %1 = vector.shape_cast %0 : vector<1x16x32xbf16> to vector<16x32xbf16>
    %c0_2 = arith.constant 0 : index
    %c0_3 = arith.constant 0 : index
    %c0_4 = arith.constant 0 : index
    %2 = vector.load %arg2[%c0_2, %c0_3, %c0_4] : memref<1x32x192xbf16, #tpu.memory_space<vmem>>, vector<1x32x192xbf16>
    %3 = vector.shape_cast %2 : vector<1x32x192xbf16> to vector<32x192xbf16>
    %cst = arith.constant dense<0.000000e+00> : vector<16x192xf32>
    %4 = tpu.matmul %1, %3, %cst {dimension_numbers = #tpu.dot_dimension_numbers<[1], [0], [0], [1], [0, 0, 1, 1], [], []>} : vector<16x32xbf16>, vector<32x192xbf16>, vector<16x192xf32> -> vector<16x192xf32>
    %c0_5 = arith.constant 0 : index
    %c0_6 = arith.constant 0 : index
    %c0_7 = arith.constant 0 : index
    %5 = vector.load %arg6[%c0_5, %c0_6, %c0_7] : memref<1x1x192xf32, #tpu.memory_space<vmem>>, vector<1x1x192xf32>
    %6 = vector.shape_cast %5 : vector<1x1x192xf32> to vector<1x192xf32>
    %7 = vector.broadcast %6 : vector<1x192xf32> to vector<16x192xf32>
    %8 = arith.addf %4, %7 : vector<16x192xf32>
    %c0_8 = arith.constant 0 : index
    %c0_9 = arith.constant 0 : index
    %9 = vector.load %arg11[%c0_8, %c0_9] : memref<16x192xf32, #tpu.memory_space<vmem>>, vector<16x192xf32>
    tpu.vector_store %arg11[%c0_8, %c0_9], %8 {strides = array<i32>} : memref<16x192xf32, #tpu.memory_space<vmem>>, vector<16x192xf32>,
    %c0_10 = arith.constant 0 : index
    %c0_11 = arith.constant 0 : index
    %c0_12 = arith.constant 0 : index
    %10 = vector.load %arg3[%c0_10, %c0_11, %c0_12] : memref<1x32x192xbf16, #tpu.memory_space<vmem>>, vector<1x32x192xbf16>
    %11 = vector.shape_cast %10 : vector<1x32x192xbf16> to vector<32x192xbf16>
    %cst_13 = arith.constant dense<0.000000e+00> : vector<16x192xf32>
    %12 = tpu.matmul %1, %11, %cst_13 {dimension_numbers = #tpu.dot_dimension_numbers<[1], [0], [0], [1], [0, 0, 1, 1], [], []>} : vector<16x32xbf16>, vector<32x192xbf16>, vector<16x192xf32> -> vector<16x192xf32>
    %c0_14 = arith.constant 0 : index
    %c0_15 = arith.constant 0 : index
    %c0_16 = arith.constant 0 : index
    %13 = vector.load %arg7[%c0_14, %c0_15, %c0_16] : memref<1x1x192xf32, #tpu.memory_space<vmem>>, vector<1x1x192xf32>
    %14 = vector.shape_cast %13 : vector<1x1x192xf32> to vector<1x192xf32>
    %15 = vector.broadcast %14 : vector<1x192xf32> to vector<16x192xf32>
    %16 = arith.addf %12, %15 : vector<16x192xf32>
    %c0_17 = arith.constant 0 : index
    %c0_18 = arith.constant 0 : index
    %17 = vector.load %arg12[%c0_17, %c0_18] : memref<16x192xf32, #tpu.memory_space<vmem>>, vector<16x192xf32>
    tpu.vector_store %arg12[%c0_17, %c0_18], %16 {strides = array<i32>} : memref<16x192xf32, #tpu.memory_space<vmem>>, vector<16x192xf32>,
    %c0_19 = arith.constant 0 : index
    %c0_20 = arith.constant 0 : index
    %c0_21 = arith.constant 0 : index
    %18 = vector.load %arg4[%c0_19, %c0_20, %c0_21] : memref<1x64x192xbf16, #tpu.memory_space<vmem>>, vector<1x64x192xbf16>
    %19 = vector.shape_cast %18 : vector<1x64x192xbf16> to vector<64x192xbf16>
    %c0_22 = arith.constant 0 : index
    %c0_23 = arith.constant 0 : index
    %c0_24 = arith.constant 0 : index
    %20 = vector.load %arg5[%c0_22, %c0_23, %c0_24] : memref<1x64x192xbf16, #tpu.memory_space<vmem>>, vector<1x64x192xbf16>
    %21 = vector.shape_cast %20 : vector<1x64x192xbf16> to vector<64x192xbf16>
    %c0_25 = arith.constant 0 : index
    %c0_26 = arith.constant 0 : index
    %c0_27 = arith.constant 0 : index
    %22 = vector.load %arg8[%c0_25, %c0_26, %c0_27] : memref<1x1x64xf32, #tpu.memory_space<vmem>>, vector<1x1x64xf32>
    %23 = vector.shape_cast %22 : vector<1x1x64xf32> to vector<1x64xf32>
    %24 = vector.shape_cast %23 : vector<1x64xf32> to vector<1x64xf32>
    %25 = vector.broadcast %24 : vector<1x64xf32> to vector<2x64xf32>
    %c0_28 = arith.constant 0 : index
    %c0_29 = arith.constant 0 : index
    %c0_30 = arith.constant 0 : index
    %26 = vector.load %arg9[%c0_28, %c0_29, %c0_30] : memref<1x1x64xf32, #tpu.memory_space<vmem>>, vector<1x1x64xf32>
    %27 = vector.shape_cast %26 : vector<1x1x64xf32> to vector<1x64xf32>
    %28 = vector.shape_cast %27 : vector<1x64xf32> to vector<1x64xf32>
    %29 = vector.broadcast %28 : vector<1x64xf32> to vector<2x64xf32>
    %cst_31 = arith.constant 0.000000e+00 : f32
    %30 = vector.broadcast %cst_31 : f32 to vector<2x64xf32>
    %cst_32 = arith.constant 0.000000e+00 : f32
    %31 = vector.broadcast %cst_32 : f32 to vector<2x64xf32>
    %32 = arith.truncf %30 : vector<2x64xf32> to vector<2x64xbf16>
    %cst_33 = arith.constant dense<0.000000e+00> : vector<2x192xf32>
    %33 = tpu.matmul %32, %19, %cst_33 {dimension_numbers = #tpu.dot_dimension_numbers<[1], [0], [0], [1], [0, 0, 1, 1], [], []>} : vector<2x64xbf16>, vector<64x192xbf16>, vector<2x192xf32> -> vector<2x192xf32>
    %34 = arith.truncf %31 : vector<2x64xf32> to vector<2x64xbf16>
    %cst_34 = arith.constant dense<0.000000e+00> : vector<2x192xf32>
    %35 = tpu.matmul %34, %21, %cst_34 {dimension_numbers = #tpu.dot_dimension_numbers<[1], [0], [0], [1], [0, 0, 1, 1], [], []>} : vector<2x64xbf16>, vector<64x192xbf16>, vector<2x192xf32> -> vector<2x192xf32>
    %c0_35 = arith.constant 0 : index
    %c0_36 = arith.constant 0 : index
    %36 = vector.load %arg11[%c0_35, %c0_36] : memref<16x192xf32, #tpu.memory_space<vmem>>, vector<2x192xf32>
    %c14 = arith.constant 14 : index
    %c0_37 = arith.constant 0 : index
    %37 = vector.load %arg12[%c14, %c0_37] : memref<16x192xf32, #tpu.memory_space<vmem>>, vector<2x192xf32>
    %38 = vector.extract_strided_slice %36 {offsets = [0, 0], sizes = [2, 128], strides = [1, 1]} : vector<2x192xf32> to vector<2x128xf32>
    %39 = vector.extract_strided_slice %33 {offsets = [0, 0], sizes = [2, 128], strides = [1, 1]} : vector<2x192xf32> to vector<2x128xf32>
    %40 = arith.addf %38, %39 : vector<2x128xf32>
    %41 = arith.negf %40 : vector<2x128xf32>
    %42 = math.exp %41 : vector<2x128xf32>
    %cst_38 = arith.constant 1.000000e+00 : f32
    %43 = vector.broadcast %cst_38 : f32 to vector<2x128xf32>
    %44 = arith.addf %43, %42 : vector<2x128xf32>
    %45 = arith.divf %43, %44 : vector<2x128xf32>
    %46 = vector.extract_strided_slice %37 {offsets = [0, 0], sizes = [2, 128], strides = [1, 1]} : vector<2x192xf32> to vector<2x128xf32>
    %47 = vector.extract_strided_slice %35 {offsets = [0, 0], sizes = [2, 128], strides = [1, 1]} : vector<2x192xf32> to vector<2x128xf32>
    %48 = arith.addf %46, %47 : vector<2x128xf32>
    %49 = arith.negf %48 : vector<2x128xf32>
    %50 = math.exp %49 : vector<2x128xf32>
    %cst_39 = arith.constant 1.000000e+00 : f32
    %51 = vector.broadcast %cst_39 : f32 to vector<2x128xf32>
    %52 = arith.addf %51, %50 : vector<2x128xf32>
    %53 = arith.divf %51, %52 : vector<2x128xf32>
    %54 = vector.extract_strided_slice %36 {offsets = [0, 128], sizes = [2, 64], strides = [1, 1]} : vector<2x192xf32> to vector<2x64xf32>
    %55 = vector.extract_strided_slice %45 {offsets = [0, 0], sizes = [2, 64], strides = [1, 1]} : vector<2x128xf32> to vector<2x64xf32>
    %56 = vector.extract_strided_slice %33 {offsets = [0, 128], sizes = [2, 64], strides = [1, 1]} : vector<2x192xf32> to vector<2x64xf32>
    %57 = arith.addf %56, %25 : vector<2x64xf32>
    %58 = arith.mulf %55, %57 : vector<2x64xf32>
    %59 = arith.addf %54, %58 : vector<2x64xf32>
    %60 = math.tanh %59 : vector<2x64xf32>
    %61 = vector.extract_strided_slice %37 {offsets = [0, 128], sizes = [2, 64], strides = [1, 1]} : vector<2x192xf32> to vector<2x64xf32>
    %62 = vector.extract_strided_slice %53 {offsets = [0, 0], sizes = [2, 64], strides = [1, 1]} : vector<2x128xf32> to vector<2x64xf32>
    %63 = vector.extract_strided_slice %35 {offsets = [0, 128], sizes = [2, 64], strides = [1, 1]} : vector<2x192xf32> to vector<2x64xf32>
    %64 = arith.addf %63, %29 : vector<2x64xf32>
    %65 = arith.mulf %62, %64 : vector<2x64xf32>
    %66 = arith.addf %61, %65 : vector<2x64xf32>
    %67 = math.tanh %66 : vector<2x64xf32>
    %68 = vector.extract_strided_slice %45 {offsets = [0, 64], sizes = [2, 64], strides = [1, 1]} : vector<2x128xf32> to vector<2x64xf32>
    %69 = arith.subf %30, %60 : vector<2x64xf32>
    %70 = arith.mulf %68, %69 : vector<2x64xf32>
    %71 = arith.addf %60, %70 : vector<2x64xf32>
    %72 = vector.extract_strided_slice %53 {offsets = [0, 64], sizes = [2, 64], strides = [1, 1]} : vector<2x128xf32> to vector<2x64xf32>
    %73 = arith.subf %31, %67 : vector<2x64xf32>
    %74 = arith.mulf %72, %73 : vector<2x64xf32>
    %75 = arith.addf %67, %74 : vector<2x64xf32>
    %76 = tpu.concatenate %71, %75 in 1 : vector<2x64xf32>, vector<2x64xf32> -> vector<2x128xf32>
    %c0_40 = arith.constant 0 : index
    %c0_41 = arith.constant 0 : index
    %c0_42 = arith.constant 0 : index
    %77 = vector.load %arg10[%c0_40, %c0_41, %c0_42] : memref<1x16x128xf32, #tpu.memory_space<vmem>>, vector<1x2x128xf32>
    %78 = vector.shape_cast %77 : vector<1x2x128xf32> to vector<2x128xf32>
    %79 = vector.shape_cast %76 : vector<2x128xf32> to vector<1x2x128xf32>
    tpu.vector_store %arg10[%c0_40, %c0_41, %c0_42], %79 {strides = array<i32>} : memref<1x16x128xf32, #tpu.memory_space<vmem>>, vector<1x2x128xf32>,
    %80 = arith.truncf %71 : vector<2x64xf32> to vector<2x64xbf16>
    %cst_43 = arith.constant dense<0.000000e+00> : vector<2x192xf32>
    %81 = tpu.matmul %80, %19, %cst_43 {dimension_numbers = #tpu.dot_dimension_numbers<[1], [0], [0], [1], [0, 0, 1, 1], [], []>} : vector<2x64xbf16>, vector<64x192xbf16>, vector<2x192xf32> -> vector<2x192xf32>
    %82 = arith.truncf %75 : vector<2x64xf32> to vector<2x64xbf16>
    %cst_44 = arith.constant dense<0.000000e+00> : vector<2x192xf32>
    %83 = tpu.matmul %82, %21, %cst_44 {dimension_numbers = #tpu.dot_dimension_numbers<[1], [0], [0], [1], [0, 0, 1, 1], [], []>} : vector<2x64xbf16>, vector<64x192xbf16>, vector<2x192xf32> -> vector<2x192xf32>
    %c2 = arith.constant 2 : index
    %c0_45 = arith.constant 0 : index
    %84 = vector.load %arg11[%c2, %c0_45] : memref<16x192xf32, #tpu.memory_space<vmem>>, vector<2x192xf32>
    %c12 = arith.constant 12 : index
    %c0_46 = arith.constant 0 : index
    %85 = vector.load %arg12[%c12, %c0_46] : memref<16x192xf32, #tpu.memory_space<vmem>>, vector<2x192xf32>
    %86 = vector.extract_strided_slice %84 {offsets = [0, 0], sizes = [2, 128], strides = [1, 1]} : vector<2x192xf32> to vector<2x128xf32>
    %87 = vector.extract_strided_slice %81 {offsets = [0, 0], sizes = [2, 128], strides = [1, 1]} : vector<2x192xf32> to vector<2x128xf32>
    %88 = arith.addf %86, %87 : vector<2x128xf32>
    %89 = arith.negf %88 : vector<2x128xf32>
    %90 = math.exp %89 : vector<2x128xf32>
    %cst_47 = arith.constant 1.000000e+00 : f32
    %91 = vector.broadcast %cst_47 : f32 to vector<2x128xf32>
    %92 = arith.addf %91, %90 : vector<2x128xf32>
    %93 = arith.divf %91, %92 : vector<2x128xf32>
    %94 = vector.extract_strided_slice %85 {offsets = [0, 0], sizes = [2, 128], strides = [1, 1]} : vector<2x192xf32> to vector<2x128xf32>
    %95 = vector.extract_strided_slice %83 {offsets = [0, 0], sizes = [2, 128], strides = [1, 1]} : vector<2x192xf32> to vector<2x128xf32>
    %96 = arith.addf %94, %95 : vector<2x128xf32>
    %97 = arith.negf %96 : vector<2x128xf32>
    %98 = math.exp %97 : vector<2x128xf32>
    %cst_48 = arith.constant 1.000000e+00 : f32
    %99 = vector.broadcast %cst_48 : f32 to vector<2x128xf32>
    %100 = arith.addf %99, %98 : vector<2x128xf32>
    %101 = arith.divf %99, %100 : vector<2x128xf32>
    %102 = vector.extract_strided_slice %84 {offsets = [0, 128], sizes = [2, 64], strides = [1, 1]} : vector<2x192xf32> to vector<2x64xf32>
    %103 = vector.extract_strided_slice %93 {offsets = [0, 0], sizes = [2, 64], strides = [1, 1]} : vector<2x128xf32> to vector<2x64xf32>
    %104 = vector.extract_strided_slice %81 {offsets = [0, 128], sizes = [2, 64], strides = [1, 1]} : vector<2x192xf32> to vector<2x64xf32>
    %105 = arith.addf %104, %25 : vector<2x64xf32>
    %106 = arith.mulf %103, %105 : vector<2x64xf32>
    %107 = arith.addf %102, %106 : vector<2x64xf32>
    %108 = math.tanh %107 : vector<2x64xf32>
    %109 = vector.extract_strided_slice %85 {offsets = [0, 128], sizes = [2, 64], strides = [1, 1]} : vector<2x192xf32> to vector<2x64xf32>
    %110 = vector.extract_strided_slice %101 {offsets = [0, 0], sizes = [2, 64], strides = [1, 1]} : vector<2x128xf32> to vector<2x64xf32>
    %111 = vector.extract_strided_slice %83 {offsets = [0, 128], sizes = [2, 64], strides = [1, 1]} : vector<2x192xf32> to vector<2x64xf32>
    %112 = arith.addf %111, %29 : vector<2x64xf32>
    %113 = arith.mulf %110, %112 : vector<2x64xf32>
    %114 = arith.addf %109, %113 : vector<2x64xf32>
    %115 = math.tanh %114 : vector<2x64xf32>
    %116 = vector.extract_strided_slice %93 {offsets = [0, 64], sizes = [2, 64], strides = [1, 1]} : vector<2x128xf32> to vector<2x64xf32>
    %117 = arith.subf %71, %108 : vector<2x64xf32>
    %118 = arith.mulf %116, %117 : vector<2x64xf32>
    %119 = arith.addf %108, %118 : vector<2x64xf32>
    %120 = vector.extract_strided_slice %101 {offsets = [0, 64], sizes = [2, 64], strides = [1, 1]} : vector<2x128xf32> to vector<2x64xf32>
    %121 = arith.subf %75, %115 : vector<2x64xf32>
    %122 = arith.mulf %120, %121 : vector<2x64xf32>
    %123 = arith.addf %115, %122 : vector<2x64xf32>
    %124 = tpu.concatenate %119, %123 in 1 : vector<2x64xf32>, vector<2x64xf32> -> vector<2x128xf32>
    %c0_49 = arith.constant 0 : index
    %c2_50 = arith.constant 2 : index
    %c0_51 = arith.constant 0 : index
    %125 = vector.load %arg10[%c0_49, %c2_50, %c0_51] : memref<1x16x128xf32, #tpu.memory_space<vmem>>, vector<1x2x128xf32>
    %126 = vector.shape_cast %125 : vector<1x2x128xf32> to vector<2x128xf32>
    %127 = vector.shape_cast %124 : vector<2x128xf32> to vector<1x2x128xf32>
    tpu.vector_store %arg10[%c0_49, %c2_50, %c0_51], %127 {strides = array<i32>} : memref<1x16x128xf32, #tpu.memory_space<vmem>>, vector<1x2x128xf32>,
    %128 = arith.truncf %119 : vector<2x64xf32> to vector<2x64xbf16>
    %cst_52 = arith.constant dense<0.000000e+00> : vector<2x192xf32>
    %129 = tpu.matmul %128, %19, %cst_52 {dimension_numbers = #tpu.dot_dimension_numbers<[1], [0], [0], [1], [0, 0, 1, 1], [], []>} : vector<2x64xbf16>, vector<64x192xbf16>, vector<2x192xf32> -> vector<2x192xf32>
    %130 = arith.truncf %123 : vector<2x64xf32> to vector<2x64xbf16>
    %cst_53 = arith.constant dense<0.000000e+00> : vector<2x192xf32>
    %131 = tpu.matmul %130, %21, %cst_53 {dimension_numbers = #tpu.dot_dimension_numbers<[1], [0], [0], [1], [0, 0, 1, 1], [], []>} : vector<2x64xbf16>, vector<64x192xbf16>, vector<2x192xf32> -> vector<2x192xf32>
    %c4 = arith.constant 4 : index
    %c0_54 = arith.constant 0 : index
    %132 = vector.load %arg11[%c4, %c0_54] : memref<16x192xf32, #tpu.memory_space<vmem>>, vector<2x192xf32>
    %c10 = arith.constant 10 : index
    %c0_55 = arith.constant 0 : index
    %133 = vector.load %arg12[%c10, %c0_55] : memref<16x192xf32, #tpu.memory_space<vmem>>, vector<2x192xf32>
    %134 = vector.extract_strided_slice %132 {offsets = [0, 0], sizes = [2, 128], strides = [1, 1]} : vector<2x192xf32> to vector<2x128xf32>
    %135 = vector.extract_strided_slice %129 {offsets = [0, 0], sizes = [2, 128], strides = [1, 1]} : vector<2x192xf32> to vector<2x128xf32>
    %136 = arith.addf %134, %135 : vector<2x128xf32>
    %137 = arith.negf %136 : vector<2x128xf32>
    %138 = math.exp %137 : vector<2x128xf32>
    %cst_56 = arith.constant 1.000000e+00 : f32
    %139 = vector.broadcast %cst_56 : f32 to vector<2x128xf32>
    %140 = arith.addf %139, %138 : vector<2x128xf32>
    %141 = arith.divf %139, %140 : vector<2x128xf32>
    %142 = vector.extract_strided_slice %133 {offsets = [0, 0], sizes = [2, 128], strides = [1, 1]} : vector<2x192xf32> to vector<2x128xf32>
    %143 = vector.extract_strided_slice %131 {offsets = [0, 0], sizes = [2, 128], strides = [1, 1]} : vector<2x192xf32> to vector<2x128xf32>
    %144 = arith.addf %142, %143 : vector<2x128xf32>
    %145 = arith.negf %144 : vector<2x128xf32>
    %146 = math.exp %145 : vector<2x128xf32>
    %cst_57 = arith.constant 1.000000e+00 : f32
    %147 = vector.broadcast %cst_57 : f32 to vector<2x128xf32>
    %148 = arith.addf %147, %146 : vector<2x128xf32>
    %149 = arith.divf %147, %148 : vector<2x128xf32>
    %150 = vector.extract_strided_slice %132 {offsets = [0, 128], sizes = [2, 64], strides = [1, 1]} : vector<2x192xf32> to vector<2x64xf32>
    %151 = vector.extract_strided_slice %141 {offsets = [0, 0], sizes = [2, 64], strides = [1, 1]} : vector<2x128xf32> to vector<2x64xf32>
    %152 = vector.extract_strided_slice %129 {offsets = [0, 128], sizes = [2, 64], strides = [1, 1]} : vector<2x192xf32> to vector<2x64xf32>
    %153 = arith.addf %152, %25 : vector<2x64xf32>
    %154 = arith.mulf %151, %153 : vector<2x64xf32>
    %155 = arith.addf %150, %154 : vector<2x64xf32>
    %156 = math.tanh %155 : vector<2x64xf32>
    %157 = vector.extract_strided_slice %133 {offsets = [0, 128], sizes = [2, 64], strides = [1, 1]} : vector<2x192xf32> to vector<2x64xf32>
    %158 = vector.extract_strided_slice %149 {offsets = [0, 0], sizes = [2, 64], strides = [1, 1]} : vector<2x128xf32> to vector<2x64xf32>
    %159 = vector.extract_strided_slice %131 {offsets = [0, 128], sizes = [2, 64], strides = [1, 1]} : vector<2x192xf32> to vector<2x64xf32>
    %160 = arith.addf %159, %29 : vector<2x64xf32>
    %161 = arith.mulf %158, %160 : vector<2x64xf32>
    %162 = arith.addf %157, %161 : vector<2x64xf32>
    %163 = math.tanh %162 : vector<2x64xf32>
    %164 = vector.extract_strided_slice %141 {offsets = [0, 64], sizes = [2, 64], strides = [1, 1]} : vector<2x128xf32> to vector<2x64xf32>
    %165 = arith.subf %119, %156 : vector<2x64xf32>
    %166 = arith.mulf %164, %165 : vector<2x64xf32>
    %167 = arith.addf %156, %166 : vector<2x64xf32>
    %168 = vector.extract_strided_slice %149 {offsets = [0, 64], sizes = [2, 64], strides = [1, 1]} : vector<2x128xf32> to vector<2x64xf32>
    %169 = arith.subf %123, %163 : vector<2x64xf32>
    %170 = arith.mulf %168, %169 : vector<2x64xf32>
    %171 = arith.addf %163, %170 : vector<2x64xf32>
    %172 = tpu.concatenate %167, %171 in 1 : vector<2x64xf32>, vector<2x64xf32> -> vector<2x128xf32>
    %c0_58 = arith.constant 0 : index
    %c4_59 = arith.constant 4 : index
    %c0_60 = arith.constant 0 : index
    %173 = vector.load %arg10[%c0_58, %c4_59, %c0_60] : memref<1x16x128xf32, #tpu.memory_space<vmem>>, vector<1x2x128xf32>
    %174 = vector.shape_cast %173 : vector<1x2x128xf32> to vector<2x128xf32>
    %175 = vector.shape_cast %172 : vector<2x128xf32> to vector<1x2x128xf32>
    tpu.vector_store %arg10[%c0_58, %c4_59, %c0_60], %175 {strides = array<i32>} : memref<1x16x128xf32, #tpu.memory_space<vmem>>, vector<1x2x128xf32>,
    %176 = arith.truncf %167 : vector<2x64xf32> to vector<2x64xbf16>
    %cst_61 = arith.constant dense<0.000000e+00> : vector<2x192xf32>
    %177 = tpu.matmul %176, %19, %cst_61 {dimension_numbers = #tpu.dot_dimension_numbers<[1], [0], [0], [1], [0, 0, 1, 1], [], []>} : vector<2x64xbf16>, vector<64x192xbf16>, vector<2x192xf32> -> vector<2x192xf32>
    %178 = arith.truncf %171 : vector<2x64xf32> to vector<2x64xbf16>
    %cst_62 = arith.constant dense<0.000000e+00> : vector<2x192xf32>
    %179 = tpu.matmul %178, %21, %cst_62 {dimension_numbers = #tpu.dot_dimension_numbers<[1], [0], [0], [1], [0, 0, 1, 1], [], []>} : vector<2x64xbf16>, vector<64x192xbf16>, vector<2x192xf32> -> vector<2x192xf32>
    %c6 = arith.constant 6 : index
    %c0_63 = arith.constant 0 : index
    %180 = vector.load %arg11[%c6, %c0_63] : memref<16x192xf32, #tpu.memory_space<vmem>>, vector<2x192xf32>
    %c8 = arith.constant 8 : index
    %c0_64 = arith.constant 0 : index
    %181 = vector.load %arg12[%c8, %c0_64] : memref<16x192xf32, #tpu.memory_space<vmem>>, vector<2x192xf32>
    %182 = vector.extract_strided_slice %180 {offsets = [0, 0], sizes = [2, 128], strides = [1, 1]} : vector<2x192xf32> to vector<2x128xf32>
    %183 = vector.extract_strided_slice %177 {offsets = [0, 0], sizes = [2, 128], strides = [1, 1]} : vector<2x192xf32> to vector<2x128xf32>
    %184 = arith.addf %182, %183 : vector<2x128xf32>
    %185 = arith.negf %184 : vector<2x128xf32>
    %186 = math.exp %185 : vector<2x128xf32>
    %cst_65 = arith.constant 1.000000e+00 : f32
    %187 = vector.broadcast %cst_65 : f32 to vector<2x128xf32>
    %188 = arith.addf %187, %186 : vector<2x128xf32>
    %189 = arith.divf %187, %188 : vector<2x128xf32>
    %190 = vector.extract_strided_slice %181 {offsets = [0, 0], sizes = [2, 128], strides = [1, 1]} : vector<2x192xf32> to vector<2x128xf32>
    %191 = vector.extract_strided_slice %179 {offsets = [0, 0], sizes = [2, 128], strides = [1, 1]} : vector<2x192xf32> to vector<2x128xf32>
    %192 = arith.addf %190, %191 : vector<2x128xf32>
    %193 = arith.negf %192 : vector<2x128xf32>
    %194 = math.exp %193 : vector<2x128xf32>
    %cst_66 = arith.constant 1.000000e+00 : f32
    %195 = vector.broadcast %cst_66 : f32 to vector<2x128xf32>
    %196 = arith.addf %195, %194 : vector<2x128xf32>
    %197 = arith.divf %195, %196 : vector<2x128xf32>
    %198 = vector.extract_strided_slice %180 {offsets = [0, 128], sizes = [2, 64], strides = [1, 1]} : vector<2x192xf32> to vector<2x64xf32>
    %199 = vector.extract_strided_slice %189 {offsets = [0, 0], sizes = [2, 64], strides = [1, 1]} : vector<2x128xf32> to vector<2x64xf32>
    %200 = vector.extract_strided_slice %177 {offsets = [0, 128], sizes = [2, 64], strides = [1, 1]} : vector<2x192xf32> to vector<2x64xf32>
    %201 = arith.addf %200, %25 : vector<2x64xf32>
    %202 = arith.mulf %199, %201 : vector<2x64xf32>
    %203 = arith.addf %198, %202 : vector<2x64xf32>
    %204 = math.tanh %203 : vector<2x64xf32>
    %205 = vector.extract_strided_slice %181 {offsets = [0, 128], sizes = [2, 64], strides = [1, 1]} : vector<2x192xf32> to vector<2x64xf32>
    %206 = vector.extract_strided_slice %197 {offsets = [0, 0], sizes = [2, 64], strides = [1, 1]} : vector<2x128xf32> to vector<2x64xf32>
    %207 = vector.extract_strided_slice %179 {offsets = [0, 128], sizes = [2, 64], strides = [1, 1]} : vector<2x192xf32> to vector<2x64xf32>
    %208 = arith.addf %207, %29 : vector<2x64xf32>
    %209 = arith.mulf %206, %208 : vector<2x64xf32>
    %210 = arith.addf %205, %209 : vector<2x64xf32>
    %211 = math.tanh %210 : vector<2x64xf32>
    %212 = vector.extract_strided_slice %189 {offsets = [0, 64], sizes = [2, 64], strides = [1, 1]} : vector<2x128xf32> to vector<2x64xf32>
    %213 = arith.subf %167, %204 : vector<2x64xf32>
    %214 = arith.mulf %212, %213 : vector<2x64xf32>
    %215 = arith.addf %204, %214 : vector<2x64xf32>
    %216 = vector.extract_strided_slice %197 {offsets = [0, 64], sizes = [2, 64], strides = [1, 1]} : vector<2x128xf32> to vector<2x64xf32>
    %217 = arith.subf %171, %211 : vector<2x64xf32>
    %218 = arith.mulf %216, %217 : vector<2x64xf32>
    %219 = arith.addf %211, %218 : vector<2x64xf32>
    %220 = tpu.concatenate %215, %219 in 1 : vector<2x64xf32>, vector<2x64xf32> -> vector<2x128xf32>
    %c0_67 = arith.constant 0 : index
    %c6_68 = arith.constant 6 : index
    %c0_69 = arith.constant 0 : index
    %221 = vector.load %arg10[%c0_67, %c6_68, %c0_69] : memref<1x16x128xf32, #tpu.memory_space<vmem>>, vector<1x2x128xf32>
    %222 = vector.shape_cast %221 : vector<1x2x128xf32> to vector<2x128xf32>
    %223 = vector.shape_cast %220 : vector<2x128xf32> to vector<1x2x128xf32>
    tpu.vector_store %arg10[%c0_67, %c6_68, %c0_69], %223 {strides = array<i32>} : memref<1x16x128xf32, #tpu.memory_space<vmem>>, vector<1x2x128xf32>,
    %224 = arith.truncf %215 : vector<2x64xf32> to vector<2x64xbf16>
    %cst_70 = arith.constant dense<0.000000e+00> : vector<2x192xf32>
    %225 = tpu.matmul %224, %19, %cst_70 {dimension_numbers = #tpu.dot_dimension_numbers<[1], [0], [0], [1], [0, 0, 1, 1], [], []>} : vector<2x64xbf16>, vector<64x192xbf16>, vector<2x192xf32> -> vector<2x192xf32>
    %226 = arith.truncf %219 : vector<2x64xf32> to vector<2x64xbf16>
    %cst_71 = arith.constant dense<0.000000e+00> : vector<2x192xf32>
    %227 = tpu.matmul %226, %21, %cst_71 {dimension_numbers = #tpu.dot_dimension_numbers<[1], [0], [0], [1], [0, 0, 1, 1], [], []>} : vector<2x64xbf16>, vector<64x192xbf16>, vector<2x192xf32> -> vector<2x192xf32>
    %c8_72 = arith.constant 8 : index
    %c0_73 = arith.constant 0 : index
    %228 = vector.load %arg11[%c8_72, %c0_73] : memref<16x192xf32, #tpu.memory_space<vmem>>, vector<2x192xf32>
    %c6_74 = arith.constant 6 : index
    %c0_75 = arith.constant 0 : index
    %229 = vector.load %arg12[%c6_74, %c0_75] : memref<16x192xf32, #tpu.memory_space<vmem>>, vector<2x192xf32>
    %230 = vector.extract_strided_slice %228 {offsets = [0, 0], sizes = [2, 128], strides = [1, 1]} : vector<2x192xf32> to vector<2x128xf32>
    %231 = vector.extract_strided_slice %225 {offsets = [0, 0], sizes = [2, 128], strides = [1, 1]} : vector<2x192xf32> to vector<2x128xf32>
    %232 = arith.addf %230, %231 : vector<2x128xf32>
    %233 = arith.negf %232 : vector<2x128xf32>
    %234 = math.exp %233 : vector<2x128xf32>
    %cst_76 = arith.constant 1.000000e+00 : f32
    %235 = vector.broadcast %cst_76 : f32 to vector<2x128xf32>
    %236 = arith.addf %235, %234 : vector<2x128xf32>
    %237 = arith.divf %235, %236 : vector<2x128xf32>
    %238 = vector.extract_strided_slice %229 {offsets = [0, 0], sizes = [2, 128], strides = [1, 1]} : vector<2x192xf32> to vector<2x128xf32>
    %239 = vector.extract_strided_slice %227 {offsets = [0, 0], sizes = [2, 128], strides = [1, 1]} : vector<2x192xf32> to vector<2x128xf32>
    %240 = arith.addf %238, %239 : vector<2x128xf32>
    %241 = arith.negf %240 : vector<2x128xf32>
    %242 = math.exp %241 : vector<2x128xf32>
    %cst_77 = arith.constant 1.000000e+00 : f32
    %243 = vector.broadcast %cst_77 : f32 to vector<2x128xf32>
    %244 = arith.addf %243, %242 : vector<2x128xf32>
    %245 = arith.divf %243, %244 : vector<2x128xf32>
    %246 = vector.extract_strided_slice %228 {offsets = [0, 128], sizes = [2, 64], strides = [1, 1]} : vector<2x192xf32> to vector<2x64xf32>
    %247 = vector.extract_strided_slice %237 {offsets = [0, 0], sizes = [2, 64], strides = [1, 1]} : vector<2x128xf32> to vector<2x64xf32>
    %248 = vector.extract_strided_slice %225 {offsets = [0, 128], sizes = [2, 64], strides = [1, 1]} : vector<2x192xf32> to vector<2x64xf32>
    %249 = arith.addf %248, %25 : vector<2x64xf32>
    %250 = arith.mulf %247, %249 : vector<2x64xf32>
    %251 = arith.addf %246, %250 : vector<2x64xf32>
    %252 = math.tanh %251 : vector<2x64xf32>
    %253 = vector.extract_strided_slice %229 {offsets = [0, 128], sizes = [2, 64], strides = [1, 1]} : vector<2x192xf32> to vector<2x64xf32>
    %254 = vector.extract_strided_slice %245 {offsets = [0, 0], sizes = [2, 64], strides = [1, 1]} : vector<2x128xf32> to vector<2x64xf32>
    %255 = vector.extract_strided_slice %227 {offsets = [0, 128], sizes = [2, 64], strides = [1, 1]} : vector<2x192xf32> to vector<2x64xf32>
    %256 = arith.addf %255, %29 : vector<2x64xf32>
    %257 = arith.mulf %254, %256 : vector<2x64xf32>
    %258 = arith.addf %253, %257 : vector<2x64xf32>
    %259 = math.tanh %258 : vector<2x64xf32>
    %260 = vector.extract_strided_slice %237 {offsets = [0, 64], sizes = [2, 64], strides = [1, 1]} : vector<2x128xf32> to vector<2x64xf32>
    %261 = arith.subf %215, %252 : vector<2x64xf32>
    %262 = arith.mulf %260, %261 : vector<2x64xf32>
    %263 = arith.addf %252, %262 : vector<2x64xf32>
    %264 = vector.extract_strided_slice %245 {offsets = [0, 64], sizes = [2, 64], strides = [1, 1]} : vector<2x128xf32> to vector<2x64xf32>
    %265 = arith.subf %219, %259 : vector<2x64xf32>
    %266 = arith.mulf %264, %265 : vector<2x64xf32>
    %267 = arith.addf %259, %266 : vector<2x64xf32>
    %268 = tpu.concatenate %263, %267 in 1 : vector<2x64xf32>, vector<2x64xf32> -> vector<2x128xf32>
    %c0_78 = arith.constant 0 : index
    %c8_79 = arith.constant 8 : index
    %c0_80 = arith.constant 0 : index
    %269 = vector.load %arg10[%c0_78, %c8_79, %c0_80] : memref<1x16x128xf32, #tpu.memory_space<vmem>>, vector<1x2x128xf32>
    %270 = vector.shape_cast %269 : vector<1x2x128xf32> to vector<2x128xf32>
    %271 = vector.shape_cast %268 : vector<2x128xf32> to vector<1x2x128xf32>
    tpu.vector_store %arg10[%c0_78, %c8_79, %c0_80], %271 {strides = array<i32>} : memref<1x16x128xf32, #tpu.memory_space<vmem>>, vector<1x2x128xf32>,
    %272 = arith.truncf %263 : vector<2x64xf32> to vector<2x64xbf16>
    %cst_81 = arith.constant dense<0.000000e+00> : vector<2x192xf32>
    %273 = tpu.matmul %272, %19, %cst_81 {dimension_numbers = #tpu.dot_dimension_numbers<[1], [0], [0], [1], [0, 0, 1, 1], [], []>} : vector<2x64xbf16>, vector<64x192xbf16>, vector<2x192xf32> -> vector<2x192xf32>
    %274 = arith.truncf %267 : vector<2x64xf32> to vector<2x64xbf16>
    %cst_82 = arith.constant dense<0.000000e+00> : vector<2x192xf32>
    %275 = tpu.matmul %274, %21, %cst_82 {dimension_numbers = #tpu.dot_dimension_numbers<[1], [0], [0], [1], [0, 0, 1, 1], [], []>} : vector<2x64xbf16>, vector<64x192xbf16>, vector<2x192xf32> -> vector<2x192xf32>
    %c10_83 = arith.constant 10 : index
    %c0_84 = arith.constant 0 : index
    %276 = vector.load %arg11[%c10_83, %c0_84] : memref<16x192xf32, #tpu.memory_space<vmem>>, vector<2x192xf32>
    %c4_85 = arith.constant 4 : index
    %c0_86 = arith.constant 0 : index
    %277 = vector.load %arg12[%c4_85, %c0_86] : memref<16x192xf32, #tpu.memory_space<vmem>>, vector<2x192xf32>
    %278 = vector.extract_strided_slice %276 {offsets = [0, 0], sizes = [2, 128], strides = [1, 1]} : vector<2x192xf32> to vector<2x128xf32>
    %279 = vector.extract_strided_slice %273 {offsets = [0, 0], sizes = [2, 128], strides = [1, 1]} : vector<2x192xf32> to vector<2x128xf32>
    %280 = arith.addf %278, %279 : vector<2x128xf32>
    %281 = arith.negf %280 : vector<2x128xf32>
    %282 = math.exp %281 : vector<2x128xf32>
    %cst_87 = arith.constant 1.000000e+00 : f32
    %283 = vector.broadcast %cst_87 : f32 to vector<2x128xf32>
    %284 = arith.addf %283, %282 : vector<2x128xf32>
    %285 = arith.divf %283, %284 : vector<2x128xf32>
    %286 = vector.extract_strided_slice %277 {offsets = [0, 0], sizes = [2, 128], strides = [1, 1]} : vector<2x192xf32> to vector<2x128xf32>
    %287 = vector.extract_strided_slice %275 {offsets = [0, 0], sizes = [2, 128], strides = [1, 1]} : vector<2x192xf32> to vector<2x128xf32>
    %288 = arith.addf %286, %287 : vector<2x128xf32>
    %289 = arith.negf %288 : vector<2x128xf32>
    %290 = math.exp %289 : vector<2x128xf32>
    %cst_88 = arith.constant 1.000000e+00 : f32
    %291 = vector.broadcast %cst_88 : f32 to vector<2x128xf32>
    %292 = arith.addf %291, %290 : vector<2x128xf32>
    %293 = arith.divf %291, %292 : vector<2x128xf32>
    %294 = vector.extract_strided_slice %276 {offsets = [0, 128], sizes = [2, 64], strides = [1, 1]} : vector<2x192xf32> to vector<2x64xf32>
    %295 = vector.extract_strided_slice %285 {offsets = [0, 0], sizes = [2, 64], strides = [1, 1]} : vector<2x128xf32> to vector<2x64xf32>
    %296 = vector.extract_strided_slice %273 {offsets = [0, 128], sizes = [2, 64], strides = [1, 1]} : vector<2x192xf32> to vector<2x64xf32>
    %297 = arith.addf %296, %25 : vector<2x64xf32>
    %298 = arith.mulf %295, %297 : vector<2x64xf32>
    %299 = arith.addf %294, %298 : vector<2x64xf32>
    %300 = math.tanh %299 : vector<2x64xf32>
    %301 = vector.extract_strided_slice %277 {offsets = [0, 128], sizes = [2, 64], strides = [1, 1]} : vector<2x192xf32> to vector<2x64xf32>
    %302 = vector.extract_strided_slice %293 {offsets = [0, 0], sizes = [2, 64], strides = [1, 1]} : vector<2x128xf32> to vector<2x64xf32>
    %303 = vector.extract_strided_slice %275 {offsets = [0, 128], sizes = [2, 64], strides = [1, 1]} : vector<2x192xf32> to vector<2x64xf32>
    %304 = arith.addf %303, %29 : vector<2x64xf32>
    %305 = arith.mulf %302, %304 : vector<2x64xf32>
    %306 = arith.addf %301, %305 : vector<2x64xf32>
    %307 = math.tanh %306 : vector<2x64xf32>
    %308 = vector.extract_strided_slice %285 {offsets = [0, 64], sizes = [2, 64], strides = [1, 1]} : vector<2x128xf32> to vector<2x64xf32>
    %309 = arith.subf %263, %300 : vector<2x64xf32>
    %310 = arith.mulf %308, %309 : vector<2x64xf32>
    %311 = arith.addf %300, %310 : vector<2x64xf32>
    %312 = vector.extract_strided_slice %293 {offsets = [0, 64], sizes = [2, 64], strides = [1, 1]} : vector<2x128xf32> to vector<2x64xf32>
    %313 = arith.subf %267, %307 : vector<2x64xf32>
    %314 = arith.mulf %312, %313 : vector<2x64xf32>
    %315 = arith.addf %307, %314 : vector<2x64xf32>
    %316 = tpu.concatenate %311, %315 in 1 : vector<2x64xf32>, vector<2x64xf32> -> vector<2x128xf32>
    %c0_89 = arith.constant 0 : index
    %c10_90 = arith.constant 10 : index
    %c0_91 = arith.constant 0 : index
    %317 = vector.load %arg10[%c0_89, %c10_90, %c0_91] : memref<1x16x128xf32, #tpu.memory_space<vmem>>, vector<1x2x128xf32>
    %318 = vector.shape_cast %317 : vector<1x2x128xf32> to vector<2x128xf32>
    %319 = vector.shape_cast %316 : vector<2x128xf32> to vector<1x2x128xf32>
    tpu.vector_store %arg10[%c0_89, %c10_90, %c0_91], %319 {strides = array<i32>} : memref<1x16x128xf32, #tpu.memory_space<vmem>>, vector<1x2x128xf32>,
    %320 = arith.truncf %311 : vector<2x64xf32> to vector<2x64xbf16>
    %cst_92 = arith.constant dense<0.000000e+00> : vector<2x192xf32>
    %321 = tpu.matmul %320, %19, %cst_92 {dimension_numbers = #tpu.dot_dimension_numbers<[1], [0], [0], [1], [0, 0, 1, 1], [], []>} : vector<2x64xbf16>, vector<64x192xbf16>, vector<2x192xf32> -> vector<2x192xf32>
    %322 = arith.truncf %315 : vector<2x64xf32> to vector<2x64xbf16>
    %cst_93 = arith.constant dense<0.000000e+00> : vector<2x192xf32>
    %323 = tpu.matmul %322, %21, %cst_93 {dimension_numbers = #tpu.dot_dimension_numbers<[1], [0], [0], [1], [0, 0, 1, 1], [], []>} : vector<2x64xbf16>, vector<64x192xbf16>, vector<2x192xf32> -> vector<2x192xf32>
    %c12_94 = arith.constant 12 : index
    %c0_95 = arith.constant 0 : index
    %324 = vector.load %arg11[%c12_94, %c0_95] : memref<16x192xf32, #tpu.memory_space<vmem>>, vector<2x192xf32>
    %c2_96 = arith.constant 2 : index
    %c0_97 = arith.constant 0 : index
    %325 = vector.load %arg12[%c2_96, %c0_97] : memref<16x192xf32, #tpu.memory_space<vmem>>, vector<2x192xf32>
    %326 = vector.extract_strided_slice %324 {offsets = [0, 0], sizes = [2, 128], strides = [1, 1]} : vector<2x192xf32> to vector<2x128xf32>
    %327 = vector.extract_strided_slice %321 {offsets = [0, 0], sizes = [2, 128], strides = [1, 1]} : vector<2x192xf32> to vector<2x128xf32>
    %328 = arith.addf %326, %327 : vector<2x128xf32>
    %329 = arith.negf %328 : vector<2x128xf32>
    %330 = math.exp %329 : vector<2x128xf32>
    %cst_98 = arith.constant 1.000000e+00 : f32
    %331 = vector.broadcast %cst_98 : f32 to vector<2x128xf32>
    %332 = arith.addf %331, %330 : vector<2x128xf32>
    %333 = arith.divf %331, %332 : vector<2x128xf32>
    %334 = vector.extract_strided_slice %325 {offsets = [0, 0], sizes = [2, 128], strides = [1, 1]} : vector<2x192xf32> to vector<2x128xf32>
    %335 = vector.extract_strided_slice %323 {offsets = [0, 0], sizes = [2, 128], strides = [1, 1]} : vector<2x192xf32> to vector<2x128xf32>
    %336 = arith.addf %334, %335 : vector<2x128xf32>
    %337 = arith.negf %336 : vector<2x128xf32>
    %338 = math.exp %337 : vector<2x128xf32>
    %cst_99 = arith.constant 1.000000e+00 : f32
    %339 = vector.broadcast %cst_99 : f32 to vector<2x128xf32>
    %340 = arith.addf %339, %338 : vector<2x128xf32>
    %341 = arith.divf %339, %340 : vector<2x128xf32>
    %342 = vector.extract_strided_slice %324 {offsets = [0, 128], sizes = [2, 64], strides = [1, 1]} : vector<2x192xf32> to vector<2x64xf32>
    %343 = vector.extract_strided_slice %333 {offsets = [0, 0], sizes = [2, 64], strides = [1, 1]} : vector<2x128xf32> to vector<2x64xf32>
    %344 = vector.extract_strided_slice %321 {offsets = [0, 128], sizes = [2, 64], strides = [1, 1]} : vector<2x192xf32> to vector<2x64xf32>
    %345 = arith.addf %344, %25 : vector<2x64xf32>
    %346 = arith.mulf %343, %345 : vector<2x64xf32>
    %347 = arith.addf %342, %346 : vector<2x64xf32>
    %348 = math.tanh %347 : vector<2x64xf32>
    %349 = vector.extract_strided_slice %325 {offsets = [0, 128], sizes = [2, 64], strides = [1, 1]} : vector<2x192xf32> to vector<2x64xf32>
    %350 = vector.extract_strided_slice %341 {offsets = [0, 0], sizes = [2, 64], strides = [1, 1]} : vector<2x128xf32> to vector<2x64xf32>
    %351 = vector.extract_strided_slice %323 {offsets = [0, 128], sizes = [2, 64], strides = [1, 1]} : vector<2x192xf32> to vector<2x64xf32>
    %352 = arith.addf %351, %29 : vector<2x64xf32>
    %353 = arith.mulf %350, %352 : vector<2x64xf32>
    %354 = arith.addf %349, %353 : vector<2x64xf32>
    %355 = math.tanh %354 : vector<2x64xf32>
    %356 = vector.extract_strided_slice %333 {offsets = [0, 64], sizes = [2, 64], strides = [1, 1]} : vector<2x128xf32> to vector<2x64xf32>
    %357 = arith.subf %311, %348 : vector<2x64xf32>
    %358 = arith.mulf %356, %357 : vector<2x64xf32>
    %359 = arith.addf %348, %358 : vector<2x64xf32>
    %360 = vector.extract_strided_slice %341 {offsets = [0, 64], sizes = [2, 64], strides = [1, 1]} : vector<2x128xf32> to vector<2x64xf32>
    %361 = arith.subf %315, %355 : vector<2x64xf32>
    %362 = arith.mulf %360, %361 : vector<2x64xf32>
    %363 = arith.addf %355, %362 : vector<2x64xf32>
    %364 = tpu.concatenate %359, %363 in 1 : vector<2x64xf32>, vector<2x64xf32> -> vector<2x128xf32>
    %c0_100 = arith.constant 0 : index
    %c12_101 = arith.constant 12 : index
    %c0_102 = arith.constant 0 : index
    %365 = vector.load %arg10[%c0_100, %c12_101, %c0_102] : memref<1x16x128xf32, #tpu.memory_space<vmem>>, vector<1x2x128xf32>
    %366 = vector.shape_cast %365 : vector<1x2x128xf32> to vector<2x128xf32>
    %367 = vector.shape_cast %364 : vector<2x128xf32> to vector<1x2x128xf32>
    tpu.vector_store %arg10[%c0_100, %c12_101, %c0_102], %367 {strides = array<i32>} : memref<1x16x128xf32, #tpu.memory_space<vmem>>, vector<1x2x128xf32>,
    %368 = arith.truncf %359 : vector<2x64xf32> to vector<2x64xbf16>
    %cst_103 = arith.constant dense<0.000000e+00> : vector<2x192xf32>
    %369 = tpu.matmul %368, %19, %cst_103 {dimension_numbers = #tpu.dot_dimension_numbers<[1], [0], [0], [1], [0, 0, 1, 1], [], []>} : vector<2x64xbf16>, vector<64x192xbf16>, vector<2x192xf32> -> vector<2x192xf32>
    %370 = arith.truncf %363 : vector<2x64xf32> to vector<2x64xbf16>
    %cst_104 = arith.constant dense<0.000000e+00> : vector<2x192xf32>
    %371 = tpu.matmul %370, %21, %cst_104 {dimension_numbers = #tpu.dot_dimension_numbers<[1], [0], [0], [1], [0, 0, 1, 1], [], []>} : vector<2x64xbf16>, vector<64x192xbf16>, vector<2x192xf32> -> vector<2x192xf32>
    %c14_105 = arith.constant 14 : index
    %c0_106 = arith.constant 0 : index
    %372 = vector.load %arg11[%c14_105, %c0_106] : memref<16x192xf32, #tpu.memory_space<vmem>>, vector<2x192xf32>
    %c0_107 = arith.constant 0 : index
    %c0_108 = arith.constant 0 : index
    %373 = vector.load %arg12[%c0_107, %c0_108] : memref<16x192xf32, #tpu.memory_space<vmem>>, vector<2x192xf32>
    %374 = vector.extract_strided_slice %372 {offsets = [0, 0], sizes = [2, 128], strides = [1, 1]} : vector<2x192xf32> to vector<2x128xf32>
    %375 = vector.extract_strided_slice %369 {offsets = [0, 0], sizes = [2, 128], strides = [1, 1]} : vector<2x192xf32> to vector<2x128xf32>
    %376 = arith.addf %374, %375 : vector<2x128xf32>
    %377 = arith.negf %376 : vector<2x128xf32>
    %378 = math.exp %377 : vector<2x128xf32>
    %cst_109 = arith.constant 1.000000e+00 : f32
    %379 = vector.broadcast %cst_109 : f32 to vector<2x128xf32>
    %380 = arith.addf %379, %378 : vector<2x128xf32>
    %381 = arith.divf %379, %380 : vector<2x128xf32>
    %382 = vector.extract_strided_slice %373 {offsets = [0, 0], sizes = [2, 128], strides = [1, 1]} : vector<2x192xf32> to vector<2x128xf32>
    %383 = vector.extract_strided_slice %371 {offsets = [0, 0], sizes = [2, 128], strides = [1, 1]} : vector<2x192xf32> to vector<2x128xf32>
    %384 = arith.addf %382, %383 : vector<2x128xf32>
    %385 = arith.negf %384 : vector<2x128xf32>
    %386 = math.exp %385 : vector<2x128xf32>
    %cst_110 = arith.constant 1.000000e+00 : f32
    %387 = vector.broadcast %cst_110 : f32 to vector<2x128xf32>
    %388 = arith.addf %387, %386 : vector<2x128xf32>
    %389 = arith.divf %387, %388 : vector<2x128xf32>
    %390 = vector.extract_strided_slice %372 {offsets = [0, 128], sizes = [2, 64], strides = [1, 1]} : vector<2x192xf32> to vector<2x64xf32>
    %391 = vector.extract_strided_slice %381 {offsets = [0, 0], sizes = [2, 64], strides = [1, 1]} : vector<2x128xf32> to vector<2x64xf32>
    %392 = vector.extract_strided_slice %369 {offsets = [0, 128], sizes = [2, 64], strides = [1, 1]} : vector<2x192xf32> to vector<2x64xf32>
    %393 = arith.addf %392, %25 : vector<2x64xf32>
    %394 = arith.mulf %391, %393 : vector<2x64xf32>
    %395 = arith.addf %390, %394 : vector<2x64xf32>
    %396 = math.tanh %395 : vector<2x64xf32>
    %397 = vector.extract_strided_slice %373 {offsets = [0, 128], sizes = [2, 64], strides = [1, 1]} : vector<2x192xf32> to vector<2x64xf32>
    %398 = vector.extract_strided_slice %389 {offsets = [0, 0], sizes = [2, 64], strides = [1, 1]} : vector<2x128xf32> to vector<2x64xf32>
    %399 = vector.extract_strided_slice %371 {offsets = [0, 128], sizes = [2, 64], strides = [1, 1]} : vector<2x192xf32> to vector<2x64xf32>
    %400 = arith.addf %399, %29 : vector<2x64xf32>
    %401 = arith.mulf %398, %400 : vector<2x64xf32>
    %402 = arith.addf %397, %401 : vector<2x64xf32>
    %403 = math.tanh %402 : vector<2x64xf32>
    %404 = vector.extract_strided_slice %381 {offsets = [0, 64], sizes = [2, 64], strides = [1, 1]} : vector<2x128xf32> to vector<2x64xf32>
    %405 = arith.subf %359, %396 : vector<2x64xf32>
    %406 = arith.mulf %404, %405 : vector<2x64xf32>
    %407 = arith.addf %396, %406 : vector<2x64xf32>
    %408 = vector.extract_strided_slice %389 {offsets = [0, 64], sizes = [2, 64], strides = [1, 1]} : vector<2x128xf32> to vector<2x64xf32>
    %409 = arith.subf %363, %403 : vector<2x64xf32>
    %410 = arith.mulf %408, %409 : vector<2x64xf32>
    %411 = arith.addf %403, %410 : vector<2x64xf32>
    %412 = tpu.concatenate %407, %411 in 1 : vector<2x64xf32>, vector<2x64xf32> -> vector<2x128xf32>
    %c0_111 = arith.constant 0 : index
    %c14_112 = arith.constant 14 : index
    %c0_113 = arith.constant 0 : index
    %413 = vector.load %arg10[%c0_111, %c14_112, %c0_113] : memref<1x16x128xf32, #tpu.memory_space<vmem>>, vector<1x2x128xf32>
    %414 = vector.shape_cast %413 : vector<1x2x128xf32> to vector<2x128xf32>
    %415 = vector.shape_cast %412 : vector<2x128xf32> to vector<1x2x128xf32>
    tpu.vector_store %arg10[%c0_111, %c14_112, %c0_113], %415 {strides = array<i32>} : memref<1x16x128xf32, #tpu.memory_space<vmem>>, vector<1x2x128xf32>,
    return
  }
  func.func @transform_0(%arg0: i32) -> (i32, i32, i32) {
    %c0_i32 = arith.constant 0 : i32
    %c0_i32_0 = arith.constant 0 : i32
    %c0_i32_1 = arith.constant 0 : i32
    return %arg0, %c0_i32, %c0_i32_0 : i32, i32, i32
  }
  func.func @transform_1(%arg0: i32) -> (i32, i32, i32) {
    %c0_i32 = arith.constant 0 : i32
    %c0_i32_0 = arith.constant 0 : i32
    %c0_i32_1 = arith.constant 0 : i32
    return %arg0, %c0_i32, %c0_i32_0 : i32, i32, i32
  }
  func.func @transform_2(%arg0: i32) -> (i32, i32, i32) {
    %c0_i32 = arith.constant 0 : i32
    %c0_i32_0 = arith.constant 0 : i32
    %c0_i32_1 = arith.constant 0 : i32
    return %arg0, %c0_i32, %c0_i32_0 : i32, i32, i32
  }
  func.func @transform_3(%arg0: i32) -> (i32, i32, i32) {
    %c0_i32 = arith.constant 0 : i32
    %c0_i32_0 = arith.constant 0 : i32
    %c0_i32_1 = arith.constant 0 : i32
    return %arg0, %c0_i32, %c0_i32_0 : i32, i32, i32
  }
  func.func @transform_4(%arg0: i32) -> (i32, i32, i32) {
    %c0_i32 = arith.constant 0 : i32
    %c0_i32_0 = arith.constant 0 : i32
    %c0_i32_1 = arith.constant 0 : i32
    return %arg0, %c0_i32, %c0_i32_0 : i32, i32, i32
  }
  func.func @transform_5(%arg0: i32) -> (i32, i32, i32) {
    %c0_i32 = arith.constant 0 : i32
    %c0_i32_0 = arith.constant 0 : i32
    %c0_i32_1 = arith.constant 0 : i32
    return %arg0, %c0_i32, %c0_i32_0 : i32, i32, i32
  }
  func.func @transform_6(%arg0: i32) -> (i32, i32, i32) {
    %c0_i32 = arith.constant 0 : i32
    %c0_i32_0 = arith.constant 0 : i32
    %c0_i32_1 = arith.constant 0 : i32
    return %arg0, %c0_i32, %c0_i32_0 : i32, i32, i32
  }
  func.func @transform_7(%arg0: i32) -> (i32, i32, i32) {
    %c0_i32 = arith.constant 0 : i32
    %c0_i32_0 = arith.constant 0 : i32
    %c0_i32_1 = arith.constant 0 : i32
    return %arg0, %c0_i32, %c0_i32_0 : i32, i32, i32
  }
  func.func @transform_8(%arg0: i32) -> (i32, i32, i32) {
    %c0_i32 = arith.constant 0 : i32
    %c0_i32_0 = arith.constant 0 : i32
    %c0_i32_1 = arith.constant 0 : i32
    return %arg0, %c0_i32, %c0_i32_0 : i32, i32, i32
  }
  func.func @transform_9(%arg0: i32) -> (i32, i32, i32) {
    %c0_i32 = arith.constant 0 : i32
    %c0_i32_0 = arith.constant 0 : i32
    %c0_i32_1 = arith.constant 0 : i32
    return %arg0, %c0_i32, %c0_i32_0 : i32, i32, i32
  }
}

</mosaic_0001>

<llo_original>
// kernel: tpu_custom_call.1
$region0: #{tpu_custom_call.1}
  #allocation0 [shape = 'u32[]', space=smem, size = 0x4, offset = 0x4, fixed_abs, tag = 'smem constant byte address 0x4 - core index']
  #allocation1 [shape = 'u32[72,128]{1,0:T(1,128)}', space=vmem, size = 0x9000, scoped, tag = 'internal scratch']
  #allocation2 [shape = 'f32[16,192]{1,0:T(8,128)}', space=vmem, size = 0x4000, scoped, tag = 'scratch operand']
  #allocation3 [shape = 'f32[16,192]{1,0:T(8,128)}', space=vmem, size = 0x4000, scoped, tag = 'scratch operand']
  %s0 = inlined_call_operand.hbm [shape: bf16[2,16,32], index: 0, kind: input, shape index: {}]
  %s1 = inlined_call_operand.hbm [shape: bf16[2,32,192], index: 1, kind: input, shape index: {}]
  %s2 = inlined_call_operand.hbm [shape: bf16[2,32,192], index: 2, kind: input, shape index: {}]
  %s3 = inlined_call_operand.hbm [shape: bf16[2,64,192], index: 3, kind: input, shape index: {}]
  %s4 = inlined_call_operand.hbm [shape: bf16[2,64,192], index: 4, kind: input, shape index: {}]
  %s5 = inlined_call_operand.vmem [shape: f32[2,1,192], index: 5, kind: input, shape index: {}]
  %s6 = inlined_call_operand.hbm [shape: f32[2,1,192], index: 6, kind: input, shape index: {}]
  %s7 = inlined_call_operand.vmem [shape: f32[2,1,64], index: 7, kind: input, shape index: {}]
  %s8 = inlined_call_operand.hbm [shape: f32[2,1,64], index: 8, kind: input, shape index: {}]
  %s9 = inlined_call_operand.hbm [shape: f32[2,16,128], index: 9, kind: output, shape index: {}]
  %s10 = sld [smem:[#allocation0]]
  $region97: #{tpu_custom_call.1} parent=0
    _
  %s12 = ssub.s32 1, %s10
  %s13 = scalar_select 0, %s12, %s10
  $region1: #{tpu_custom_call.1} parent=0
    #allocation4 [shape = 'u8[8192]{0}', space=vmem, size = 0x2000, scoped, tag = 'input window, operand 0']
    #allocation5 [shape = 's32[2]{0}', space=sflag, size = 0x8, scoped, tag = 'scoped memory for tpu_custom_call.1']
    #allocation6 [shape = 's32[2]{0}', space=sflag, size = 0x8, scoped, tag = 'scoped memory for tpu_custom_call.1']
    #allocation7 [shape = 'u8[32768]{0}', space=vmem, size = 0x8000, scoped, tag = 'input window, operand 1']
    #allocation8 [shape = 's32[2]{0}', space=sflag, size = 0x8, scoped, tag = 'scoped memory for tpu_custom_call.1']
    #allocation9 [shape = 'u8[32768]{0}', space=vmem, size = 0x8000, scoped, tag = 'input window, operand 2']
    #allocation10 [shape = 'u8[65536]{0}', space=vmem, size = 0x10000, scoped, tag = 'input window, operand 3']
    #allocation11 [shape = 's32[2]{0}', space=sflag, size = 0x8, scoped, tag = 'scoped memory for tpu_custom_call.1']
    #allocation12 [shape = 'u8[65536]{0}', space=vmem, size = 0x10000, scoped, tag = 'input window, operand 4']
    #allocation13 [shape = 'u8[2048]{0}', space=vmem, size = 0x800, scoped, tag = 'input window, operand 6']
    #allocation14 [shape = 's32[2]{0}', space=sflag, size = 0x8, scoped, tag = 'scoped memory for tpu_custom_call.1']
    #allocation15 [shape = 'u8[1024]{0}', space=vmem, size = 0x400, scoped, tag = 'input window, operand 8']
    #allocation16 [shape = 'u8[16384]{0}', space=vmem, size = 0x4000, scoped, tag = 'output window, operand 0']
    %14 = vsyncpa [#allocation5], 0
    %s15 = scalar_lea.sflag [#allocation5], 1
    %16 = vsyncpa %s15, 0
    %17 = vsyncpa [#allocation8], 0
    %s18 = scalar_lea.sflag [#allocation8], 1
    %19 = vsyncpa %s18, 0
    %20 = vsyncpa [#allocation11], 0
    %s21 = scalar_lea.sflag [#allocation11], 1
    %22 = vsyncpa %s21, 0
    %23 = vsyncpa [#allocation14], 0
    %s24 = scalar_lea.sflag [#allocation14], 1
    %25 = vsyncpa %s24, 0
    %26 = vsyncpa [#allocation6], 0
    %s27 = scalar_lea.sflag [#allocation6], 1
    %28 = vsyncpa %s27, 0
    loop: start=0, step=1, limit=4
    $region2: #{tpu_custom_call.1} parent=1 // loop_pre_header
      _
    $region3: #{tpu_custom_call.1} parent=1 // loop_header
      %s30 = sphi 0, %s34
      %p31 = scmp.ge.s32.totalorder %s30, 4
      %s40 = sphi 0, %s42
      %s43 = sphi 0, %s40
      %s44 = sphi 0, %s43
      %s60 = sphi 0, %s44
      %s66 = sphi 0, %s68
      %s69 = sphi 0, %s66
      %s70 = sphi 0, %s69
      %s86 = sphi 0, %s70
      %s92 = sphi 0, %s94
      %s95 = sphi 0, %s92
      %s96 = sphi 0, %s95
      %s112 = sphi 0, %s96
      %s118 = sphi 0, %s120
      %s121 = sphi 0, %s118
      %s122 = sphi 0, %s121
      %s138 = sphi 0, %s122
      %s144 = sphi 0, %s146
      %s147 = sphi 0, %s144
      %s148 = sphi 0, %s147
      %s164 = sphi 0, %s148
      %s170 = sphi 0, %s172
      %s173 = sphi 0, %s170
      %s174 = sphi 0, %s173
      %s190 = sphi 0, %s174
      %s196 = sphi 0, %s198
      %s199 = sphi 0, %s196
      %s200 = sphi 0, %s199
      %s216 = sphi 0, %s200
      %s222 = sphi 0, %s224
      %s225 = sphi 0, %s222
      %s226 = sphi 0, %s225
      %s242 = sphi 0, %s226
      %s248 = sphi 0, %s250
      %s251 = sphi 0, %s248
      %s252 = sphi 0, %s251
      %s268 = sphi 0, %s252
      %s274 = sphi 0, %s276
      %s277 = sphi 0, %s274
      %s278 = sphi 0, %s277
      %s294 = sphi 0, %s278
    $region4: #{tpu_custom_call.1} parent=1 // loop_header_branch
      %33 = sbr.rel (%p31) target = $region8
    $region5: #{tpu_custom_call.1} parent=1 // loop_body
      %s35 = ssub.s32 %s30, 1
      %s36 = ssub.s32 %s30, 2
      %s37 = sadd.s32 %s30, 1
      %s38 = ssub.s32 %s30, %s37
      %p39 = scmp.eq.s32.totalorder %s38, 0
      %s41 = sadd.s32 %s40, 1
      %s42 = scalar_select %p39, %s40, %s41
      %p45 = pneg %p39
      %p46 = scmp.eq.s32.totalorder %s30, 1
      %p47 = por %p45, %p46
      %p48 = scmp.ne.s32.totalorder %s40, %s43
      %p49 = scmp.eq.s32.totalorder %s30, 0
      %p50 = por %p48, %p49
      %p51 = scmp.ne.s32.totalorder %s40, %s43
      %p52 = scmp.eq.s32.totalorder %s35, 1
      %p53 = por %p51, %p52
      %p54 = scmp.ne.s32.totalorder %s43, %s44
      %p55 = scmp.eq.s32.totalorder %s35, 0
      %p56 = por %p54, %p55
      %p57 = scmp.ne.s32.totalorder %s43, %s44
      %p58 = scmp.eq.s32.totalorder %s36, 1
      %p59 = por %p57, %p58
      %p61 = scmp.ne.s32.totalorder %s44, %s60
      %p62 = scmp.eq.s32.totalorder %s36, 0
      %p63 = por %p61, %p62
      %s64 = ssub.s32 %s30, %s37
      %p65 = scmp.eq.s32.totalorder %s64, 0
      %s67 = sadd.s32 %s66, 1
      %s68 = scalar_select %p65, %s66, %s67
      %p71 = pneg %p65
      %p72 = scmp.eq.s32.totalorder %s30, 1
      %p73 = por %p71, %p72
      %p74 = scmp.ne.s32.totalorder %s66, %s69
      %p75 = scmp.eq.s32.totalorder %s30, 0
      %p76 = por %p74, %p75
      %p77 = scmp.ne.s32.totalorder %s66, %s69
      %p78 = scmp.eq.s32.totalorder %s35, 1
      %p79 = por %p77, %p78
      %p80 = scmp.ne.s32.totalorder %s69, %s70
      %p81 = scmp.eq.s32.totalorder %s35, 0
      %p82 = por %p80, %p81
      %p83 = scmp.ne.s32.totalorder %s69, %s70
      %p84 = scmp.eq.s32.totalorder %s36, 1
      %p85 = por %p83, %p84
      %p87 = scmp.ne.s32.totalorder %s70, %s86
      %p88 = scmp.eq.s32.totalorder %s36, 0
      %p89 = por %p87, %p88
      %s90 = ssub.s32 %s30, %s37
      %p91 = scmp.eq.s32.totalorder %s90, 0
      %s93 = sadd.s32 %s92, 1
      %s94 = scalar_select %p91, %s92, %s93
      %p97 = pneg %p91
      %p98 = scmp.eq.s32.totalorder %s30, 1
      %p99 = por %p97, %p98
      %p100 = scmp.ne.s32.totalorder %s92, %s95
      %p101 = scmp.eq.s32.totalorder %s30, 0
      %p102 = por %p100, %p101
      %p103 = scmp.ne.s32.totalorder %s92, %s95
      %p104 = scmp.eq.s32.totalorder %s35, 1
      %p105 = por %p103, %p104
      %p106 = scmp.ne.s32.totalorder %s95, %s96
      %p107 = scmp.eq.s32.totalorder %s35, 0
      %p108 = por %p106, %p107
      %p109 = scmp.ne.s32.totalorder %s95, %s96
      %p110 = scmp.eq.s32.totalorder %s36, 1
      %p111 = por %p109, %p110
      %p113 = scmp.ne.s32.totalorder %s96, %s112
      %p114 = scmp.eq.s32.totalorder %s36, 0
      %p115 = por %p113, %p114
      %s116 = ssub.s32 %s30, %s37
      %p117 = scmp.eq.s32.totalorder %s116, 0
      %s119 = sadd.s32 %s118, 1
      %s120 = scalar_select %p117, %s118, %s119
      %p123 = pneg %p117
      %p124 = scmp.eq.s32.totalorder %s30, 1
      %p125 = por %p123, %p124
      %p126 = scmp.ne.s32.totalorder %s118, %s121
      %p127 = scmp.eq.s32.totalorder %s30, 0
      %p128 = por %p126, %p127
      %p129 = scmp.ne.s32.totalorder %s118, %s121
      %p130 = scmp.eq.s32.totalorder %s35, 1
      %p131 = por %p129, %p130
      %p132 = scmp.ne.s32.totalorder %s121, %s122
      %p133 = scmp.eq.s32.totalorder %s35, 0
      %p134 = por %p132, %p133
      %p135 = scmp.ne.s32.totalorder %s121, %s122
      %p136 = scmp.eq.s32.totalorder %s36, 1
      %p137 = por %p135, %p136
      %p139 = scmp.ne.s32.totalorder %s122, %s138
      %p140 = scmp.eq.s32.totalorder %s36, 0
      %p141 = por %p139, %p140
      %s142 = ssub.s32 %s30, %s37
      %p143 = scmp.eq.s32.totalorder %s142, 0
      %s145 = sadd.s32 %s144, 1
      %s146 = scalar_select %p143, %s144, %s145
      %p149 = pneg %p143
      %p150 = scmp.eq.s32.totalorder %s30, 1
      %p151 = por %p149, %p150
      %p152 = scmp.ne.s32.totalorder %s144, %s147
      %p153 = scmp.eq.s32.totalorder %s30, 0
      %p154 = por %p152, %p153
      %p155 = scmp.ne.s32.totalorder %s144, %s147
      %p156 = scmp.eq.s32.totalorder %s35, 1
      %p157 = por %p155, %p156
      %p158 = scmp.ne.s32.totalorder %s147, %s148
      %p159 = scmp.eq.s32.totalorder %s35, 0
      %p160 = por %p158, %p159
      %p161 = scmp.ne.s32.totalorder %s147, %s148
      %p162 = scmp.eq.s32.totalorder %s36, 1
      %p163 = por %p161, %p162
      %p165 = scmp.ne.s32.totalorder %s148, %s164
      %p166 = scmp.eq.s32.totalorder %s36, 0
      %p167 = por %p165, %p166
      %s168 = ssub.s32 %s30, %s37
      %p169 = scmp.eq.s32.totalorder %s168, 0
      %s171 = sadd.s32 %s170, 1
      %s172 = scalar_select %p169, %s170, %s171
      %p175 = pneg %p169
      %p176 = scmp.eq.s32.totalorder %s30, 1
      %p177 = por %p175, %p176
      %p178 = scmp.ne.s32.totalorder %s170, %s173
      %p179 = scmp.eq.s32.totalorder %s30, 0
      %p180 = por %p178, %p179
      %p181 = scmp.ne.s32.totalorder %s170, %s173
      %p182 = scmp.eq.s32.totalorder %s35, 1
      %p183 = por %p181, %p182
      %p184 = scmp.ne.s32.totalorder %s173, %s174
      %p185 = scmp.eq.s32.totalorder %s35, 0
      %p186 = por %p184, %p185
      %p187 = scmp.ne.s32.totalorder %s173, %s174
      %p188 = scmp.eq.s32.totalorder %s36, 1
      %p189 = por %p187, %p188
      %p191 = scmp.ne.s32.totalorder %s174, %s190
      %p192 = scmp.eq.s32.totalorder %s36, 0
      %p193 = por %p191, %p192
      %s194 = ssub.s32 %s30, %s37
      %p195 = scmp.eq.s32.totalorder %s194, 0
      %s197 = sadd.s32 %s196, 1
      %s198 = scalar_select %p195, %s196, %s197
      %p201 = pneg %p195
      %p202 = scmp.eq.s32.totalorder %s30, 1
      %p203 = por %p201, %p202
      %p204 = scmp.ne.s32.totalorder %s196, %s199
      %p205 = scmp.eq.s32.totalorder %s30, 0
      %p206 = por %p204, %p205
      %p207 = scmp.ne.s32.totalorder %s196, %s199
      %p208 = scmp.eq.s32.totalorder %s35, 1
      %p209 = por %p207, %p208
      %p210 = scmp.ne.s32.totalorder %s199, %s200
      %p211 = scmp.eq.s32.totalorder %s35, 0
      %p212 = por %p210, %p211
      %p213 = scmp.ne.s32.totalorder %s199, %s200
      %p214 = scmp.eq.s32.totalorder %s36, 1
      %p215 = por %p213, %p214
      %p217 = scmp.ne.s32.totalorder %s200, %s216
      %p218 = scmp.eq.s32.totalorder %s36, 0
      %p219 = por %p217, %p218
      %s220 = ssub.s32 %s30, %s37
      %p221 = scmp.eq.s32.totalorder %s220, 0
      %s223 = sadd.s32 %s222, 1
      %s224 = scalar_select %p221, %s222, %s223
      %p227 = pneg %p221
      %p228 = scmp.eq.s32.totalorder %s30, 1
      %p229 = por %p227, %p228
      %p230 = scmp.ne.s32.totalorder %s222, %s225
      %p231 = scmp.eq.s32.totalorder %s30, 0
      %p232 = por %p230, %p231
      %p233 = scmp.ne.s32.totalorder %s222, %s225
      %p234 = scmp.eq.s32.totalorder %s35, 1
      %p235 = por %p233, %p234
      %p236 = scmp.ne.s32.totalorder %s225, %s226
      %p237 = scmp.eq.s32.totalorder %s35, 0
      %p238 = por %p236, %p237
      %p239 = scmp.ne.s32.totalorder %s225, %s226
      %p240 = scmp.eq.s32.totalorder %s36, 1
      %p241 = por %p239, %p240
      %p243 = scmp.ne.s32.totalorder %s226, %s242
      %p244 = scmp.eq.s32.totalorder %s36, 0
      %p245 = por %p243, %p244
      %s246 = ssub.s32 %s30, %s37
      %p247 = scmp.eq.s32.totalorder %s246, 0
      %s249 = sadd.s32 %s248, 1
      %s250 = scalar_select %p247, %s248, %s249
      %p253 = pneg %p247
      %p254 = scmp.eq.s32.totalorder %s30, 1
      %p255 = por %p253, %p254
      %p256 = scmp.ne.s32.totalorder %s248, %s251
      %p257 = scmp.eq.s32.totalorder %s30, 0
      %p258 = por %p256, %p257
      %p259 = scmp.ne.s32.totalorder %s248, %s251
      %p260 = scmp.eq.s32.totalorder %s35, 1
      %p261 = por %p259, %p260
      %p262 = scmp.ne.s32.totalorder %s251, %s252
      %p263 = scmp.eq.s32.totalorder %s35, 0
      %p264 = por %p262, %p263
      %p265 = scmp.ne.s32.totalorder %s251, %s252
      %p266 = scmp.eq.s32.totalorder %s36, 1
      %p267 = por %p265, %p266
      %p269 = scmp.ne.s32.totalorder %s252, %s268
      %p270 = scmp.eq.s32.totalorder %s36, 0
      %p271 = por %p269, %p270
      %s272 = ssub.s32 %s30, %s37
      %p273 = scmp.eq.s32.totalorder %s272, 0
      %s275 = sadd.s32 %s274, 1
      %s276 = scalar_select %p273, %s274, %s275
      %p279 = pneg %p273
      %p280 = scmp.eq.s32.totalorder %s30, 1
      %p281 = por %p279, %p280
      %p282 = scmp.ne.s32.totalorder %s274, %s277
      %p283 = scmp.eq.s32.totalorder %s30, 0
      %p284 = por %p282, %p283
      %p285 = scmp.ne.s32.totalorder %s274, %s277
      %p286 = scmp.eq.s32.totalorder %s35, 1
      %p287 = por %p285, %p286
      %p288 = scmp.ne.s32.totalorder %s277, %s278
      %p289 = scmp.eq.s32.totalorder %s35, 0
      %p290 = por %p288, %p289
      %p291 = scmp.ne.s32.totalorder %s277, %s278
      %p292 = scmp.eq.s32.totalorder %s36, 1
      %p293 = por %p291, %p292
      %p295 = scmp.ne.s32.totalorder %s278, %s294
      %p296 = scmp.eq.s32.totalorder %s36, 0
      %p297 = por %p295, %p296
      %p298 = scmp.le.s32.totalorder 1, %s30
      %p299 = scmp.lt.s32.totalorder %s30, 3
      %p300 = pnand %p298, %p299
      %p301 = pneg %p300
      // Predicated region
      $region9: #{tpu_custom_call.1} parent=5 // pred_check
        _
      $region10: #{tpu_custom_call.1} parent=5 // pred_check_branch
        %303 = sbr.rel (%p300) target = $region12
      $region11: #{tpu_custom_call.1} parent=5 // pred_region
        %s304 = ssub.s32 %s30, 1
      $region12: #{tpu_custom_call.1} parent=5 // pred_fallthru
        _
      %p305 = scmp.lt.s32.totalorder %s30, 2
      // Predicated region
      $region13: #{tpu_custom_call.1} parent=5 // pred_check
        %p306 = pneg %p305
      $region14: #{tpu_custom_call.1} parent=5 // pred_check_branch
        %308 = sbr.rel (%p306) target = $region16
      $region15: #{tpu_custom_call.1} parent=5 // pred_region
        // Predicated region
        $region17: #{tpu_custom_call.1} parent=15 // pred_check
          %p309 = pneg %p50
        $region18: #{tpu_custom_call.1} parent=15 // pred_check_branch
          %311 = sbr.rel (%p309) target = $region20
        $region19: #{tpu_custom_call.1} parent=15 // pred_region
          %s312 = sand.u32 %s40, 1
          %s313 = scalar_lea.sflag [#allocation5], %s312
          %s314 = sand.u32 %s40, 1
          %s315 = smul.addr %s314, 8
          %s316 = scalar_lea.vmem [#allocation4], %s315
          %318 = vsyncadd %s313, 0
          %s319 = smul.addr %s30, 2
          %s320 = smul.addr %s319, 4
          %s321 = scalar_lea.hbm %s0, %s320
          %s322 = sshll.u32 %s321, 4
          %s323 = int_to_ptr.hbm [resolvable:$true] %s322
          %s324 = sshll.u32 %s316, 4
          %s325 = int_to_ptr.vmem [resolvable:$true] %s324
          %330 = dma.hbm_to_vmem [thread:$0]  %s323, 128, %s325, %s313, 64, 64, 4
        $region20: #{tpu_custom_call.1} parent=15 // pred_fallthru
          _
        // Predicated region
        $region21: #{tpu_custom_call.1} parent=15 // pred_check
          %p331 = pneg %p76
        $region22: #{tpu_custom_call.1} parent=15 // pred_check_branch
          %333 = sbr.rel (%p331) target = $region24
        $region23: #{tpu_custom_call.1} parent=15 // pred_region
          %s334 = sand.u32 %s30, 1
          %s335 = scalar_lea.sflag [#allocation8], %s334
          %s336 = sand.u32 %s66, 1
          %s337 = smul.addr %s336, 32
          %s338 = scalar_lea.vmem [#allocation7], %s337
          %340 = vsyncadd %s335, 0
          %s341 = smul.addr %s30, 8
          %s342 = smul.addr %s341, 4
          %s343 = scalar_lea.hbm %s1, %s342
          %s344 = sshll.u32 %s343, 4
          %s345 = int_to_ptr.hbm [resolvable:$true] %s344
          %s346 = sshll.u32 %s338, 4
          %s347 = int_to_ptr.vmem [resolvable:$true] %s346
          %352 = dma.hbm_to_vmem [thread:$0]  %s345, 512, %s347, %s335, 128, 128, 8
        $region24: #{tpu_custom_call.1} parent=15 // pred_fallthru
          _
        // Predicated region
        $region25: #{tpu_custom_call.1} parent=15 // pred_check
          %p353 = pneg %p102
        $region26: #{tpu_custom_call.1} parent=15 // pred_check_branch
          %355 = sbr.rel (%p353) target = $region28
        $region27: #{tpu_custom_call.1} parent=15 // pred_region
          %s356 = sand.u32 %s30, 1
          %s357 = scalar_lea.sflag [#allocation8], %s356
          %s358 = sand.u32 %s92, 1
          %s359 = smul.addr %s358, 32
          %s360 = scalar_lea.vmem [#allocation9], %s359
          %362 = vsyncadd %s357, 0
          %s363 = smul.addr %s30, 8
          %s364 = smul.addr %s363, 4
          %s365 = scalar_lea.hbm %s2, %s364
          %s366 = sshll.u32 %s365, 4
          %s367 = int_to_ptr.hbm [resolvable:$true] %s366
          %s368 = sshll.u32 %s360, 4
          %s369 = int_to_ptr.vmem [resolvable:$true] %s368
          %374 = dma.hbm_to_vmem [thread:$0]  %s367, 512, %s369, %s357, 128, 128, 8
        $region28: #{tpu_custom_call.1} parent=15 // pred_fallthru
          _
        // Predicated region
        $region29: #{tpu_custom_call.1} parent=15 // pred_check
          %p375 = pneg %p128
        $region30: #{tpu_custom_call.1} parent=15 // pred_check_branch
          %377 = sbr.rel (%p375) target = $region32
        $region31: #{tpu_custom_call.1} parent=15 // pred_region
          %s378 = sand.u32 %s30, 1
          %s379 = scalar_lea.sflag [#allocation11], %s378
          %s380 = sand.u32 %s118, 1
          %s381 = smul.addr %s380, 64
          %s382 = scalar_lea.vmem [#allocation10], %s381
          %384 = vsyncadd %s379, 0
          %s385 = smul.addr %s30, 16
          %s386 = smul.addr %s385, 4
          %s387 = scalar_lea.hbm %s3, %s386
          %s388 = sshll.u32 %s387, 4
          %s389 = int_to_ptr.hbm [resolvable:$true] %s388
          %s390 = sshll.u32 %s382, 4
          %s391 = int_to_ptr.vmem [resolvable:$true] %s390
          %396 = dma.hbm_to_vmem [thread:$0]  %s389, 1024, %s391, %s379, 128, 128, 8
        $region32: #{tpu_custom_call.1} parent=15 // pred_fallthru
          _
        // Predicated region
        $region33: #{tpu_custom_call.1} parent=15 // pred_check
          %p397 = pneg %p154
        $region34: #{tpu_custom_call.1} parent=15 // pred_check_branch
          %399 = sbr.rel (%p397) target = $region36
        $region35: #{tpu_custom_call.1} parent=15 // pred_region
          %s400 = sand.u32 %s30, 1
          %s401 = scalar_lea.sflag [#allocation11], %s400
          %s402 = sand.u32 %s144, 1
          %s403 = smul.addr %s402, 64
          %s404 = scalar_lea.vmem [#allocation12], %s403
          %406 = vsyncadd %s401, 0
          %s407 = smul.addr %s30, 16
          %s408 = smul.addr %s407, 4
          %s409 = scalar_lea.hbm %s4, %s408
          %s410 = sshll.u32 %s409, 4
          %s411 = int_to_ptr.hbm [resolvable:$true] %s410
          %s412 = sshll.u32 %s404, 4
          %s413 = int_to_ptr.vmem [resolvable:$true] %s412
          %418 = dma.hbm_to_vmem [thread:$0]  %s411, 1024, %s413, %s401, 128, 128, 8
        $region36: #{tpu_custom_call.1} parent=15 // pred_fallthru
          _
        // Predicated region
        $region37: #{tpu_custom_call.1} parent=15 // pred_check
          %p419 = pneg %p180
        $region38: #{tpu_custom_call.1} parent=15 // pred_check_branch
          %421 = sbr.rel (%p419) target = $region40
        $region39: #{tpu_custom_call.1} parent=15 // pred_region
          %p422 = scmp.lt.s32.totalorder %s30, 1
          %s423 = scalar_select %p422, %s30, 1
          %s424 = smul.addr %s423, 2
          %s425 = scalar_lea.vmem %s5, %s424
        $region40: #{tpu_custom_call.1} parent=15 // pred_fallthru
          _
        // Predicated region
        $region41: #{tpu_custom_call.1} parent=15 // pred_check
          %p426 = pneg %p206
        $region42: #{tpu_custom_call.1} parent=15 // pred_check_branch
          %428 = sbr.rel (%p426) target = $region44
        $region43: #{tpu_custom_call.1} parent=15 // pred_region
          %s429 = sand.u32 %s30, 1
          %s430 = scalar_lea.sflag [#allocation14], %s429
          %s431 = sand.u32 %s196, 1
          %s432 = smul.addr %s431, 2
          %s433 = scalar_lea.vmem [#allocation13], %s432
          %435 = vsyncadd %s430, 0
          %s436 = smul.addr %s30, 2
          %s437 = scalar_lea.hbm %s6, %s436
          %s439 = sshll.u32 %s437, 4
          %s440 = int_to_ptr.hbm [resolvable:$true] %s439
          %s441 = sshll.u32 %s433, 4
          %s442 = int_to_ptr.vmem [resolvable:$true] %s441
          %444 = dma.hbm_to_vmem [thread:$0]  %s440, 32, %s442, %s430
        $region44: #{tpu_custom_call.1} parent=15 // pred_fallthru
          _
        // Predicated region
        $region45: #{tpu_custom_call.1} parent=15 // pred_check
          %p445 = pneg %p232
        $region46: #{tpu_custom_call.1} parent=15 // pred_check_branch
          %447 = sbr.rel (%p445) target = $region48
        $region47: #{tpu_custom_call.1} parent=15 // pred_region
          %p448 = scmp.lt.s32.totalorder %s30, 1
          %s449 = scalar_select %p448, %s30, 1
          %s450 = scalar_lea.vmem %s7, %s449
        $region48: #{tpu_custom_call.1} parent=15 // pred_fallthru
          _
        // Predicated region
        $region49: #{tpu_custom_call.1} parent=15 // pred_check
          %p451 = pneg %p258
        $region50: #{tpu_custom_call.1} parent=15 // pred_check_branch
          %453 = sbr.rel (%p451) target = $region52
        $region51: #{tpu_custom_call.1} parent=15 // pred_region
          %s454 = sand.u32 %s30, 1
          %s455 = scalar_lea.sflag [#allocation14], %s454
          %s456 = sand.u32 %s248, 1
          %s457 = scalar_lea.vmem [#allocation15], %s456
          %459 = vsyncadd %s455, 0
          %s460 = scalar_lea.hbm %s8, %s30
          %s462 = sshll.u32 %s460, 4
          %s463 = int_to_ptr.hbm [resolvable:$true] %s462
          %s464 = sshll.u32 %s457, 4
          %s465 = int_to_ptr.vmem [resolvable:$true] %s464
          %467 = dma.hbm_to_vmem [thread:$0]  %s463, 16, %s465, %s455
        $region52: #{tpu_custom_call.1} parent=15 // pred_fallthru
          _
      $region16: #{tpu_custom_call.1} parent=5 // pred_fallthru
        _
      %p468 = scmp.le.s32.totalorder 1, %s30
      %p469 = scmp.lt.s32.totalorder %s30, 3
      %p470 = pnand %p468, %p469
      %p471 = pneg %p470
      // Predicated region
      $region53: #{tpu_custom_call.1} parent=5 // pred_check
        _
      $region54: #{tpu_custom_call.1} parent=5 // pred_check_branch
        %473 = sbr.rel (%p470) target = $region56
      $region55: #{tpu_custom_call.1} parent=5 // pred_region
        %s474 = ssub.s32 %s30, 1
        %s475 = sand.u32 %s43, 1
        %s476 = scalar_lea.sflag [#allocation5], %s475
        %s477 = sand.u32 %s43, 1
        %s478 = smul.addr %s477, 8
        %s479 = scalar_lea.vmem [#allocation4], %s478
        // Predicated region
        $region57: #{tpu_custom_call.1} parent=55 // pred_check
          %p480 = pneg %p56
        $region58: #{tpu_custom_call.1} parent=55 // pred_check_branch
          %482 = sbr.rel (%p480) target = $region60
        $region59: #{tpu_custom_call.1} parent=55 // pred_region
          %484 = dma.done %s476, 128
        $region60: #{tpu_custom_call.1} parent=55 // pred_fallthru
          _
        %s485 = sand.u32 %s35, 1
        %s486 = scalar_lea.sflag [#allocation8], %s485
        %s487 = sand.u32 %s69, 1
        %s488 = smul.addr %s487, 32
        %s489 = scalar_lea.vmem [#allocation7], %s488
        // Predicated region
        $region61: #{tpu_custom_call.1} parent=55 // pred_check
          %p490 = pneg %p82
        $region62: #{tpu_custom_call.1} parent=55 // pred_check_branch
          %492 = sbr.rel (%p490) target = $region64
        $region63: #{tpu_custom_call.1} parent=55 // pred_region
          %494 = dma.done %s486, 512
        $region64: #{tpu_custom_call.1} parent=55 // pred_fallthru
          _
        %s495 = sand.u32 %s35, 1
        %s496 = scalar_lea.sflag [#allocation8], %s495
        %s497 = sand.u32 %s95, 1
        %s498 = smul.addr %s497, 32
        %s499 = scalar_lea.vmem [#allocation9], %s498
        // Predicated region
        $region65: #{tpu_custom_call.1} parent=55 // pred_check
          %p500 = pneg %p108
        $region66: #{tpu_custom_call.1} parent=55 // pred_check_branch
          %502 = sbr.rel (%p500) target = $region68
        $region67: #{tpu_custom_call.1} parent=55 // pred_region
          %504 = dma.done %s496, 512
        $region68: #{tpu_custom_call.1} parent=55 // pred_fallthru
          _
        %s505 = sand.u32 %s35, 1
        %s506 = scalar_lea.sflag [#allocation11], %s505
        %s507 = sand.u32 %s121, 1
        %s508 = smul.addr %s507, 64
        %s509 = scalar_lea.vmem [#allocation10], %s508
        // Predicated region
        $region69: #{tpu_custom_call.1} parent=55 // pred_check
          %p510 = pneg %p134
        $region70: #{tpu_custom_call.1} parent=55 // pred_check_branch
          %512 = sbr.rel (%p510) target = $region72
        $region71: #{tpu_custom_call.1} parent=55 // pred_region
          %514 = dma.done %s506, 1024
        $region72: #{tpu_custom_call.1} parent=55 // pred_fallthru
          _
        %s515 = sand.u32 %s35, 1
        %s516 = scalar_lea.sflag [#allocation11], %s515
        %s517 = sand.u32 %s147, 1
        %s518 = smul.addr %s517, 64
        %s519 = scalar_lea.vmem [#allocation12], %s518
        // Predicated region
        $region73: #{tpu_custom_call.1} parent=55 // pred_check
          %p520 = pneg %p160
        $region74: #{tpu_custom_call.1} parent=55 // pred_check_branch
          %522 = sbr.rel (%p520) target = $region76
        $region75: #{tpu_custom_call.1} parent=55 // pred_region
          %524 = dma.done %s516, 1024
        $region76: #{tpu_custom_call.1} parent=55 // pred_fallthru
          _
        %s525 = sand.u32 %s35, 1
        %s526 = scalar_lea.sflag [#allocation14], %s525
        %s527 = sand.u32 %s199, 1
        %s528 = smul.addr %s527, 2
        %s529 = scalar_lea.vmem [#allocation13], %s528
        // Predicated region
        $region77: #{tpu_custom_call.1} parent=55 // pred_check
          %p530 = pneg %p212
        $region78: #{tpu_custom_call.1} parent=55 // pred_check_branch
          %532 = sbr.rel (%p530) target = $region80
        $region79: #{tpu_custom_call.1} parent=55 // pred_region
          %534 = dma.done %s526, 32
        $region80: #{tpu_custom_call.1} parent=55 // pred_fallthru
          _
        %s535 = sand.u32 %s35, 1
        %s536 = scalar_lea.sflag [#allocation14], %s535
        %s537 = sand.u32 %s251, 1
        %s538 = scalar_lea.vmem [#allocation15], %s537
        // Predicated region
        $region81: #{tpu_custom_call.1} parent=55 // pred_check
          %p539 = pneg %p264
        $region82: #{tpu_custom_call.1} parent=55 // pred_check_branch
          %541 = sbr.rel (%p539) target = $region84
        $region83: #{tpu_custom_call.1} parent=55 // pred_region
          %543 = dma.done %s536, 16
        $region84: #{tpu_custom_call.1} parent=55 // pred_fallthru
          _
        %s544 = sand.u32 %s43, 1
        %s545 = scalar_lea.sflag [#allocation5], %s544
        %s546 = sand.u32 %s43, 1
        %s547 = smul.addr %s546, 8
        %s548 = scalar_lea.vmem [#allocation4], %s547
        %p549 = pneg %p56
        %p550 = pneg %p53
        %s551 = sand.u32 %s35, 1
        %s552 = scalar_lea.sflag [#allocation8], %s551
        %s553 = sand.u32 %s69, 1
        %s554 = smul.addr %s553, 32
        %s555 = scalar_lea.vmem [#allocation7], %s554
        %p556 = pneg %p82
        %p557 = pneg %p79
        %s558 = sand.u32 %s35, 1
        %s559 = scalar_lea.sflag [#allocation8], %s558
        %s560 = sand.u32 %s95, 1
        %s561 = smul.addr %s560, 32
        %s562 = scalar_lea.vmem [#allocation9], %s561
        %p563 = pneg %p108
        %p564 = pneg %p105
        %s565 = sand.u32 %s35, 1
        %s566 = scalar_lea.sflag [#allocation11], %s565
        %s567 = sand.u32 %s121, 1
        %s568 = smul.addr %s567, 64
        %s569 = scalar_lea.vmem [#allocation10], %s568
        %p570 = pneg %p134
        %p571 = pneg %p131
        %s572 = sand.u32 %s35, 1
        %s573 = scalar_lea.sflag [#allocation11], %s572
        %s574 = sand.u32 %s147, 1
        %s575 = smul.addr %s574, 64
        %s576 = scalar_lea.vmem [#allocation12], %s575
        %p577 = pneg %p160
        %p578 = pneg %p157
        %p579 = scmp.lt.s32.totalorder %s35, 1
        %s580 = scalar_select %p579, %s35, 1
        %s581 = smul.addr %s580, 2
        %s582 = scalar_lea.vmem %s5, %s581
        %p583 = pneg %p186
        %p584 = pneg %p183
        %s585 = sand.u32 %s35, 1
        %s586 = scalar_lea.sflag [#allocation14], %s585
        %s587 = sand.u32 %s199, 1
        %s588 = smul.addr %s587, 2
        %s589 = scalar_lea.vmem [#allocation13], %s588
        %p590 = pneg %p212
        %p591 = pneg %p209
        %p592 = scmp.lt.s32.totalorder %s35, 1
        %s593 = scalar_select %p592, %s35, 1
        %s594 = scalar_lea.vmem %s7, %s593
        %p595 = pneg %p238
        %p596 = pneg %p235
        %s597 = sand.u32 %s35, 1
        %s598 = scalar_lea.sflag [#allocation14], %s597
        %s599 = sand.u32 %s251, 1
        %s600 = scalar_lea.vmem [#allocation15], %s599
        %p601 = pneg %p264
        %p602 = pneg %p261
        %p603 = pneg %p290
        %p604 = pneg %p287
        %s605 = sand.u32 %s277, 1
        %s606 = scalar_lea.sflag [#allocation6], %s605
        %s607 = sand.u32 %s277, 1
        %s608 = smul.addr %s607, 16
        %s609 = scalar_lea.vmem [#allocation16], %s608
        %p610 = scmp.lt.s32.totalorder %s35, 1
        %s611 = scalar_select %p610, %s35, 1
        %s612 = smul.addr %s611, 2
        %s613 = scalar_lea.vmem %s5, %s612
        %p614 = scmp.lt.s32.totalorder %s35, 1
        %s615 = scalar_select %p614, %s35, 1
        %s616 = scalar_lea.vmem %s7, %s615
        %v618 = vld [vmem:[%s479] sm:$0xf]
        %v619 = vld [vmem:[%s479 + $0x4] sm:$0xf]
        %v620 = vld [vmem:[%s489] sm:$0xff]
        %v621 = vld [vmem:[%s489 + $0x8] sm:$0xff]
        %v622 = vld [vmem:[%s489 + $0x10] sm:$0xff]
        %v623 = vld [vmem:[%s489 + $0x18] sm:$0xff]
        %v624 = vld [vmem:[%s613] sm:$0x3]
        %v626 = vperm.slane %v624, 0
        %v627 = vperm.slane %v624, 1
        %v632 = vunpack.c.l.b16 %v618
        %v633 = vunpack.c.l.b16 %v619
        %v634 = vpack.c.b16 %v633, %v632
        %v639 = vunpack.c.l.b16 %v620
        %v640 = vunpack.c.h.b16 %v620
        %v641 = vunpack.c.l.b16 %v621
        %v642 = vunpack.c.h.b16 %v621
        %v643 = vunpack.c.l.b16 %v622
        %v644 = vunpack.c.h.b16 %v622
        %v645 = vunpack.c.l.b16 %v623
        %v646 = vunpack.c.h.b16 %v623
        %v647 = vpack.c.b16 %v641, %v639
        %v648 = vpack.c.b16 %v642, %v640
        %v649 = vpack.c.b16 %v645, %v643
        %v650 = vpack.c.b16 %v646, %v644
        %vm655 = vcmask 261120
        %v657 = vsel %vm655, %v634, 0
        %659 = vmatpush.bf16.msra.mxu0 0
        %660 = vmatpush.bf16.msra.mxu0 0
        %661 = vmatpush.bf16.msra.mxu0 0
        %662 = vmatpush.bf16.msra.mxu0 0
        %663 = vmatpush.bf16.msra.mxu0 0
        %664 = vmatpush.bf16.msra.mxu0 0
        %665 = vmatpush.bf16.msra.mxu0 %v649
        %666 = vmatpush.bf16.msra.mxu0 %v647
        %667 = vmatmul.bf16.gmra.mxu0 %v657
        %v668 = vpop.f32.mrf.mxu0
        %v669 = vadd.f32 %v626, %v668
        %v670 = vpop.f32.mrf.mxu0
        %v671 = vadd.f32 %v626, %v670
        %672 = vdwg.mxu0
        %673 = vmatpush.bf16.msra.mxu0 0
        %674 = vmatpush.bf16.msra.mxu0 0
        %675 = vmatpush.bf16.msra.mxu0 0
        %676 = vmatpush.bf16.msra.mxu0 0
        %677 = vmatpush.bf16.msra.mxu0 0
        %678 = vmatpush.bf16.msra.mxu0 0
        %679 = vmatpush.bf16.msra.mxu0 %v650
        %680 = vmatpush.bf16.msra.mxu0 %v648
        %681 = vmatmul.bf16.gmra.mxu0 %v657
        %v682 = vpop.f32.mrf.mxu0
        %v683 = vadd.f32 %v627, %v682
        %v684 = vpop.f32.mrf.mxu0
        %v685 = vadd.f32 %v627, %v684
        %686 = vdwg.mxu0
        %687 = vst [vmem:[#allocation2] sm:$0xff] %v669
        %vm688 = vcmask 523264
        %689 = vst.msk [vmem:[#allocation2 + $0x8] sm:$0xff] %vm688, %v683
        %690 = vst [vmem:[#allocation2 + $0x10] sm:$0xff] %v671
        %691 = vst.msk [vmem:[#allocation2 + $0x18] sm:$0xff] %vm688, %v685
        %v692 = vld [vmem:[%s499] sm:$0xff]
        %v693 = vld [vmem:[%s499 + $0x8] sm:$0xff]
        %v694 = vld [vmem:[%s499 + $0x10] sm:$0xff]
        %v695 = vld [vmem:[%s499 + $0x18] sm:$0xff]
        %v696 = vld [vmem:[%s529] sm:$0x3]
        %v698 = vperm.slane %v696, 0
        %v699 = vperm.slane %v696, 1
        %v706 = vunpack.c.l.b16 %v692
        %v707 = vunpack.c.h.b16 %v692
        %v708 = vunpack.c.l.b16 %v693
        %v709 = vunpack.c.h.b16 %v693
        %v710 = vunpack.c.l.b16 %v694
        %v711 = vunpack.c.h.b16 %v694
        %v712 = vunpack.c.l.b16 %v695
        %v713 = vunpack.c.h.b16 %v695
        %v714 = vpack.c.b16 %v708, %v706
        %v715 = vpack.c.b16 %v709, %v707
        %v716 = vpack.c.b16 %v712, %v710
        %v717 = vpack.c.b16 %v713, %v711
        %722 = vmatpush.bf16.msra.mxu0 0
        %723 = vmatpush.bf16.msra.mxu0 0
        %724 = vmatpush.bf16.msra.mxu0 0
        %725 = vmatpush.bf16.msra.mxu0 0
        %726 = vmatpush.bf16.msra.mxu0 0
        %727 = vmatpush.bf16.msra.mxu0 0
        %728 = vmatpush.bf16.msra.mxu0 %v716
        %729 = vmatpush.bf16.msra.mxu0 %v714
        %730 = vmatmul.bf16.gmra.mxu0 %v657
        %v731 = vpop.f32.mrf.mxu0
        %v732 = vadd.f32 %v698, %v731
        %v733 = vpop.f32.mrf.mxu0
        %v734 = vadd.f32 %v698, %v733
        %735 = vdwg.mxu0
        %736 = vmatpush.bf16.msra.mxu0 0
        %737 = vmatpush.bf16.msra.mxu0 0
        %738 = vmatpush.bf16.msra.mxu0 0
        %739 = vmatpush.bf16.msra.mxu0 0
        %740 = vmatpush.bf16.msra.mxu0 0
        %741 = vmatpush.bf16.msra.mxu0 0
        %742 = vmatpush.bf16.msra.mxu0 %v717
        %743 = vmatpush.bf16.msra.mxu0 %v715
        %744 = vmatmul.bf16.gmra.mxu0 %v657
        %v745 = vpop.f32.mrf.mxu0
        %v746 = vadd.f32 %v699, %v745
        %v747 = vpop.f32.mrf.mxu0
        %v748 = vadd.f32 %v699, %v747
        %749 = vdwg.mxu0
        %750 = vst [vmem:[#allocation3] sm:$0xff] %v732
        %751 = vst.msk [vmem:[#allocation3 + $0x8] sm:$0xff] %vm688, %v746
        %752 = vst [vmem:[#allocation3 + $0x10] sm:$0xff] %v734
        %753 = vst.msk [vmem:[#allocation3 + $0x18] sm:$0xff] %vm688, %v748
        %v754 = vld [vmem:[%s509] sm:$0xff]
        %v755 = vld [vmem:[%s509 + $0x8] sm:$0xff]
        %v756 = vld [vmem:[%s509 + $0x10] sm:$0xff]
        %v757 = vld [vmem:[%s509 + $0x18] sm:$0xff]
        %v758 = vld [vmem:[%s509 + $0x20] sm:$0xff]
        %v759 = vld [vmem:[%s509 + $0x28] sm:$0xff]
        %v760 = vld [vmem:[%s509 + $0x30] sm:$0xff]
        %v761 = vld [vmem:[%s509 + $0x38] sm:$0xff]
        %v762 = vld [vmem:[%s519] sm:$0xff]
        %v763 = vld [vmem:[%s519 + $0x8] sm:$0xff]
        %v764 = vld [vmem:[%s519 + $0x10] sm:$0xff]
        %v765 = vld [vmem:[%s519 + $0x18] sm:$0xff]
        %v766 = vld [vmem:[%s519 + $0x20] sm:$0xff]
        %v767 = vld [vmem:[%s519 + $0x28] sm:$0xff]
        %v768 = vld [vmem:[%s519 + $0x30] sm:$0xff]
        %v769 = vld [vmem:[%s519 + $0x38] sm:$0xff]
        %v770 = vld [vmem:[%s616] sm:$0x1]
        %v772 = vperm.slane %v770, 0
        %v774 = vld [vmem:[%s538] sm:$0x1]
        %v776 = vperm.slane %v774, 0
        %v786 = vunpack.c.l.b16 %v754
        %v787 = vunpack.c.h.b16 %v754
        %v788 = vunpack.c.l.b16 %v755
        %v789 = vunpack.c.h.b16 %v755
        %v790 = vunpack.c.l.b16 %v756
        %v791 = vunpack.c.h.b16 %v756
        %v792 = vunpack.c.l.b16 %v757
        %v793 = vunpack.c.h.b16 %v757
        %v794 = vunpack.c.l.b16 %v758
        %v795 = vunpack.c.h.b16 %v758
        %v796 = vunpack.c.l.b16 %v759
        %v797 = vunpack.c.h.b16 %v759
        %v798 = vunpack.c.l.b16 %v760
        %v799 = vunpack.c.h.b16 %v760
        %v800 = vunpack.c.l.b16 %v761
        %v801 = vunpack.c.h.b16 %v761
        %v802 = vpack.c.b16 %v788, %v786
        %v803 = vpack.c.b16 %v789, %v787
        %v804 = vpack.c.b16 %v792, %v790
        %v805 = vpack.c.b16 %v793, %v791
        %v806 = vpack.c.b16 %v796, %v794
        %v807 = vpack.c.b16 %v797, %v795
        %v808 = vpack.c.b16 %v800, %v798
        %v809 = vpack.c.b16 %v801, %v799
        %v819 = vsel %vm688, 0, 0
        %821 = vmatpush.bf16.msra.mxu0 0
        %822 = vmatpush.bf16.msra.mxu0 0
        %823 = vmatpush.bf16.msra.mxu0 0
        %824 = vmatpush.bf16.msra.mxu0 0
        %825 = vmatpush.bf16.msra.mxu0 %v808
        %826 = vmatpush.bf16.msra.mxu0 %v806
        %827 = vmatpush.bf16.msra.mxu0 %v804
        %828 = vmatpush.bf16.msra.mxu0 %v802
        %829 = vmatmul.bf16.gmra.mxu0 %v819
        %v830 = vpop.f32.mrf.mxu0
        %v831 = vadd.f32 0.0, %v830
        %v832 = vpop.f32.mrf.mxu0
        %833 = vdwg.mxu0
        %834 = vmatpush.bf16.msra.mxu0 0
        %835 = vmatpush.bf16.msra.mxu0 0
        %836 = vmatpush.bf16.msra.mxu0 0
        %837 = vmatpush.bf16.msra.mxu0 0
        %838 = vmatpush.bf16.msra.mxu0 %v809
        %839 = vmatpush.bf16.msra.mxu0 %v807
        %840 = vmatpush.bf16.msra.mxu0 %v805
        %841 = vmatpush.bf16.msra.mxu0 %v803
        %842 = vmatmul.bf16.gmra.mxu0 %v819
        %v843 = vpop.f32.mrf.mxu0
        %v844 = vadd.f32 0.0, %v843
        %v845 = vpop.f32.mrf.mxu0
        %846 = vdwg.mxu0
        %v855 = vunpack.c.l.b16 %v762
        %v856 = vunpack.c.h.b16 %v762
        %v857 = vunpack.c.l.b16 %v763
        %v858 = vunpack.c.h.b16 %v763
        %v859 = vunpack.c.l.b16 %v764
        %v860 = vunpack.c.h.b16 %v764
        %v861 = vunpack.c.l.b16 %v765
        %v862 = vunpack.c.h.b16 %v765
        %v863 = vunpack.c.l.b16 %v766
        %v864 = vunpack.c.h.b16 %v766
        %v865 = vunpack.c.l.b16 %v767
        %v866 = vunpack.c.h.b16 %v767
        %v867 = vunpack.c.l.b16 %v768
        %v868 = vunpack.c.h.b16 %v768
        %v869 = vunpack.c.l.b16 %v769
        %v870 = vunpack.c.h.b16 %v769
        %v871 = vpack.c.b16 %v857, %v855
        %v872 = vpack.c.b16 %v858, %v856
        %v873 = vpack.c.b16 %v861, %v859
        %v874 = vpack.c.b16 %v862, %v860
        %v875 = vpack.c.b16 %v865, %v863
        %v876 = vpack.c.b16 %v866, %v864
        %v877 = vpack.c.b16 %v869, %v867
        %v878 = vpack.c.b16 %v870, %v868
        %887 = vmatpush.bf16.msra.mxu0 0
        %888 = vmatpush.bf16.msra.mxu0 0
        %889 = vmatpush.bf16.msra.mxu0 0
        %890 = vmatpush.bf16.msra.mxu0 0
        %891 = vmatpush.bf16.msra.mxu0 %v877
        %892 = vmatpush.bf16.msra.mxu0 %v875
        %893 = vmatpush.bf16.msra.mxu0 %v873
        %894 = vmatpush.bf16.msra.mxu0 %v871
        %895 = vmatmul.bf16.gmra.mxu0 %v819
        %v896 = vpop.f32.mrf.mxu0
        %v897 = vadd.f32 0.0, %v896
        %v898 = vpop.f32.mrf.mxu0
        %899 = vdwg.mxu0
        %900 = vmatpush.bf16.msra.mxu0 0
        %901 = vmatpush.bf16.msra.mxu0 0
        %902 = vmatpush.bf16.msra.mxu0 0
        %903 = vmatpush.bf16.msra.mxu0 0
        %904 = vmatpush.bf16.msra.mxu0 %v878
        %905 = vmatpush.bf16.msra.mxu0 %v876
        %906 = vmatpush.bf16.msra.mxu0 %v874
        %907 = vmatpush.bf16.msra.mxu0 %v872
        %908 = vmatmul.bf16.gmra.mxu0 %v819
        %v909 = vpop.f32.mrf.mxu0
        %v910 = vadd.f32 0.0, %v909
        %v911 = vpop.f32.mrf.mxu0
        %912 = vdwg.mxu0
        %v913 = vld [vmem:[#allocation2] sm:$0x3]
        %v914 = vld [vmem:[#allocation2 + $0x8] sm:$0x3]
        %v915 = vld [vmem:[#allocation3 + $0x10] sm:$0xc0]
        %v916 = vld [vmem:[#allocation3 + $0x18] sm:$0xc0]
        %v917 = vadd.f32 %v913, %v831
        %v918 = vxor.u32 %v917, 2147483648
        %v919 = vmul.f32 %v918, 1.442695
        %v920 = vpow.pop %v919
        %v921 = vadd.f32 %v920, 1.0
        %v922 = vrcp.pop %v921
        %v923 = vmul.f32 %v921, %v922
        %v924 = vsub.f32 1.0, %v923
        %v925 = vmul.f32 %v922, %v924
        %v926 = vadd.f32 %v922, %v925
        %vm927 = vweird.f32 %v921
        %vm928 = vweird.f32 %v922
        %vm929 = vmor %vm927, %vm928
        %v930 = vsel %vm929, %v922, %v926
        %v931 = vand.u32 2147483647, %v921
        %vm932 = vcmp.eq.f32.partialorder %v931, 8.507059e+37
        %v933 = vand.u32 %v921, 2147483648
        %v934 = vor.u32 1.1754944e-38, %v933
        %v935 = vsel %vm932, %v934, %v930
        %v936 = vmul.f32 1.0, %v935
        %v938 = vrot.slane %v897, 2
        %v940 = vadd.f32 %v915, %v938
        %v941 = vxor.u32 %v940, 2147483648
        %v942 = vmul.f32 %v941, 1.442695
        %v943 = vpow.pop %v942
        %v944 = vadd.f32 %v943, 1.0
        %v945 = vrcp.pop %v944
        %v946 = vmul.f32 %v944, %v945
        %v947 = vsub.f32 1.0, %v946
        %v948 = vmul.f32 %v945, %v947
        %v949 = vadd.f32 %v945, %v948
        %vm950 = vweird.f32 %v944
        %vm951 = vweird.f32 %v945
        %vm952 = vmor %vm950, %vm951
        %v953 = vsel %vm952, %v945, %v949
        %v954 = vand.u32 2147483647, %v944
        %vm955 = vcmp.eq.f32.partialorder %v954, 8.507059e+37
        %v956 = vand.u32 %v944, 2147483648
        %v957 = vor.u32 1.1754944e-38, %v956
        %v958 = vsel %vm955, %v957, %v953
        %v959 = vmul.f32 1.0, %v958
        %v960 = vadd.f32 %v844, %v772
        %v961 = vmul.f32 %v936, %v960
        %v962 = vadd.f32 %v914, %v961
        %v963 = vtanh.pop %v962
        %v964 = vadd.f32 %v910, %v776
        %v966 = vrot.slane %v964, 2
        %v968 = vmul.f32 %v959, %v966
        %v969 = vadd.f32 %v916, %v968
        %v970 = vtanh.pop %v969
        %v971 = vsub.f32 0.0, %v963
        %973 = vrot.lane.b32.xlu0 %v971, 64
        %v974 = vpop.permute.xlu0 %973
        %v976 = vmul.f32 %v936, %v974
        %978 = vrot.lane.b32.xlu0 %v976, 64
        %v979 = vpop.permute.xlu0 %978
        %v981 = vadd.f32 %v963, %v979
        %v982 = vsub.f32 0.0, %v970
        %984 = vrot.lane.b32.xlu0 %v982, 64
        %v985 = vpop.permute.xlu0 %984
        %v987 = vmul.f32 %v959, %v985
        %989 = vrot.lane.b32.xlu0 %v987, 64
        %v990 = vpop.permute.xlu0 %989
        %v992 = vadd.f32 %v970, %v990
        %v994 = vrot.slane %v992, 6
        %995 = vrot.lane.b32.xlu0 %v994, 64
        %v996 = vpop.permute.xlu0 %995
        %v998 = vsel %vm688, %v981, %v996
        %999 = vst [vmem:[%s609] sm:$0x3] %v998
        %v1000 = vpack.c.bf16 %v981, %v981
        %v1002 = vsel %vm688, %v1000, 0
        %1004 = vmatpush.bf16.msra.mxu0 0
        %1005 = vmatpush.bf16.msra.mxu0 0
        %1006 = vmatpush.bf16.msra.mxu0 0
        %1007 = vmatpush.bf16.msra.mxu0 0
        %1008 = vmatpush.bf16.msra.mxu0 %v808
        %1009 = vmatpush.bf16.msra.mxu0 %v806
        %1010 = vmatpush.bf16.msra.mxu0 %v804
        %1011 = vmatpush.bf16.msra.mxu0 %v802
        %1012 = vmatmul.bf16.gmra.mxu0 %v1002
        %v1013 = vpop.f32.mrf.mxu0
        %v1014 = vadd.f32 0.0, %v1013
        %v1015 = vpop.f32.mrf.mxu0
        %1016 = vdwg.mxu0
        %1017 = vmatpush.bf16.msra.mxu0 0
        %1018 = vmatpush.bf16.msra.mxu0 0
        %1019 = vmatpush.bf16.msra.mxu0 0
        %1020 = vmatpush.bf16.msra.mxu0 0
        %1021 = vmatpush.bf16.msra.mxu0 %v809
        %1022 = vmatpush.bf16.msra.mxu0 %v807
        %1023 = vmatpush.bf16.msra.mxu0 %v805
        %1024 = vmatpush.bf16.msra.mxu0 %v803
        %1025 = vmatmul.bf16.gmra.mxu0 %v1002
        %v1026 = vpop.f32.mrf.mxu0
        %v1027 = vadd.f32 0.0, %v1026
        %v1028 = vpop.f32.mrf.mxu0
        %1029 = vdwg.mxu0
        %v1030 = vpack.c.bf16 %v992, %v992
        %v1032 = vrot.slane %v1030, 3
        %v1034 = vsel %vm688, %v1032, 0
        %1036 = vmatpush.bf16.msra.mxu0 0
        %1037 = vmatpush.bf16.msra.mxu0 0
        %1038 = vmatpush.bf16.msra.mxu0 0
        %1039 = vmatpush.bf16.msra.mxu0 0
        %1040 = vmatpush.bf16.msra.mxu0 %v877
        %1041 = vmatpush.bf16.msra.mxu0 %v875
        %1042 = vmatpush.bf16.msra.mxu0 %v873
        %1043 = vmatpush.bf16.msra.mxu0 %v871
        %1044 = vmatmul.bf16.gmra.mxu0 %v1034
        %v1045 = vpop.f32.mrf.mxu0
        %v1046 = vadd.f32 0.0, %v1045
        %v1047 = vpop.f32.mrf.mxu0
        %1048 = vdwg.mxu0
        %1049 = vmatpush.bf16.msra.mxu0 0
        %1050 = vmatpush.bf16.msra.mxu0 0
        %1051 = vmatpush.bf16.msra.mxu0 0
        %1052 = vmatpush.bf16.msra.mxu0 0
        %1053 = vmatpush.bf16.msra.mxu0 %v878
        %1054 = vmatpush.bf16.msra.mxu0 %v876
        %1055 = vmatpush.bf16.msra.mxu0 %v874
        %1056 = vmatpush.bf16.msra.mxu0 %v872
        %1057 = vmatmul.bf16.gmra.mxu0 %v1034
        %v1058 = vpop.f32.mrf.mxu0
        %v1059 = vadd.f32 0.0, %v1058
        %v1060 = vpop.f32.mrf.mxu0
        %1061 = vdwg.mxu0
        %v1062 = vld [vmem:[#allocation2] sm:$0xc]
        %v1063 = vld [vmem:[#allocation2 + $0x8] sm:$0xc]
        %v1064 = vld [vmem:[#allocation3 + $0x10] sm:$0x30]
        %v1065 = vld [vmem:[#allocation3 + $0x18] sm:$0x30]
        %v1067 = vrot.slane %v1014, 6
        %v1069 = vadd.f32 %v1062, %v1067
        %v1070 = vxor.u32 %v1069, 2147483648
        %v1071 = vmul.f32 %v1070, 1.442695
        %v1072 = vpow.pop %v1071
        %v1073 = vadd.f32 %v1072, 1.0
        %v1074 = vrcp.pop %v1073
        %v1075 = vmul.f32 %v1073, %v1074
        %v1076 = vsub.f32 1.0, %v1075
        %v1077 = vmul.f32 %v1074, %v1076
        %v1078 = vadd.f32 %v1074, %v1077
        %vm1079 = vweird.f32 %v1073
        %vm1080 = vweird.f32 %v1074
        %vm1081 = vmor %vm1079, %vm1080
        %v1082 = vsel %vm1081, %v1074, %v1078
        %v1083 = vand.u32 2147483647, %v1073
        %vm1084 = vcmp.eq.f32.partialorder %v1083, 8.507059e+37
        %v1085 = vand.u32 %v1073, 2147483648
        %v1086 = vor.u32 1.1754944e-38, %v1085
        %v1087 = vsel %vm1084, %v1086, %v1082
        %v1088 = vmul.f32 1.0, %v1087
        %v1090 = vrot.slane %v1046, 4
        %v1092 = vadd.f32 %v1064, %v1090
        %v1093 = vxor.u32 %v1092, 2147483648
        %v1094 = vmul.f32 %v1093, 1.442695
        %v1095 = vpow.pop %v1094
        %v1096 = vadd.f32 %v1095, 1.0
        %v1097 = vrcp.pop %v1096
        %v1098 = vmul.f32 %v1096, %v1097
        %v1099 = vsub.f32 1.0, %v1098
        %v1100 = vmul.f32 %v1097, %v1099
        %v1101 = vadd.f32 %v1097, %v1100
        %vm1102 = vweird.f32 %v1096
        %vm1103 = vweird.f32 %v1097
        %vm1104 = vmor %vm1102, %vm1103
        %v1105 = vsel %vm1104, %v1097, %v1101
        %v1106 = vand.u32 2147483647, %v1096
        %vm1107 = vcmp.eq.f32.partialorder %v1106, 8.507059e+37
        %v1108 = vand.u32 %v1096, 2147483648
        %v1109 = vor.u32 1.1754944e-38, %v1108
        %v1110 = vsel %vm1107, %v1109, %v1105
        %v1111 = vmul.f32 1.0, %v1110
        %v1112 = vadd.f32 %v1027, %v772
        %v1114 = vrot.slane %v1112, 6
        %v1116 = vmul.f32 %v1088, %v1114
        %v1117 = vadd.f32 %v1063, %v1116
        %v1118 = vtanh.pop %v1117
        %v1119 = vadd.f32 %v1059, %v776
        %v1121 = vrot.slane %v1119, 4
        %v1123 = vmul.f32 %v1111, %v1121
        %v1124 = vadd.f32 %v1065, %v1123
        %v1125 = vtanh.pop %v1124
        %v1127 = vrot.slane %v1118, 2
        %v1129 = vsub.f32 %v981, %v1127
        %v1131 = vrot.slane %v1129, 6
        %1132 = vrot.lane.b32.xlu0 %v1131, 64
        %v1133 = vpop.permute.xlu0 %1132
        %v1135 = vmul.f32 %v1088, %v1133
        %1137 = vrot.lane.b32.xlu0 %v1135, 64
        %v1138 = vpop.permute.xlu0 %1137
        %v1140 = vadd.f32 %v1118, %v1138
        %v1142 = vrot.slane %v1125, 6
        %v1144 = vsub.f32 %v992, %v1142
        %v1146 = vrot.slane %v1144, 2
        %1147 = vrot.lane.b32.xlu0 %v1146, 64
        %v1148 = vpop.permute.xlu0 %1147
        %v1150 = vmul.f32 %v1111, %v1148
        %1152 = vrot.lane.b32.xlu0 %v1150, 64
        %v1153 = vpop.permute.xlu0 %1152
        %v1155 = vadd.f32 %v1125, %v1153
        %v1157 = vrot.slane %v1155, 2
        %1158 = vrot.lane.b32.xlu0 %v1157, 64
        %v1159 = vpop.permute.xlu0 %1158
        %v1161 = vsel %vm688, %v1140, %v1159
        %1162 = vst [vmem:[%s609] sm:$0xc] %v1161
        %v1163 = vpack.c.bf16 %v1140, %v1140
        %v1165 = vrot.slane %v1163, 1
        %v1167 = vsel %vm688, %v1165, 0
        %1169 = vmatpush.bf16.msra.mxu0 0
        %1170 = vmatpush.bf16.msra.mxu0 0
        %1171 = vmatpush.bf16.msra.mxu0 0
        %1172 = vmatpush.bf16.msra.mxu0 0
        %1173 = vmatpush.bf16.msra.mxu0 %v808
        %1174 = vmatpush.bf16.msra.mxu0 %v806
        %1175 = vmatpush.bf16.msra.mxu0 %v804
        %1176 = vmatpush.bf16.msra.mxu0 %v802
        %1177 = vmatmul.bf16.gmra.mxu0 %v1167
        %v1178 = vpop.f32.mrf.mxu0
        %v1179 = vadd.f32 0.0, %v1178
        %v1180 = vpop.f32.mrf.mxu0
        %1181 = vdwg.mxu0
        %1182 = vmatpush.bf16.msra.mxu0 0
        %1183 = vmatpush.bf16.msra.mxu0 0
        %1184 = vmatpush.bf16.msra.mxu0 0
        %1185 = vmatpush.bf16.msra.mxu0 0
        %1186 = vmatpush.bf16.msra.mxu0 %v809
        %1187 = vmatpush.bf16.msra.mxu0 %v807
        %1188 = vmatpush.bf16.msra.mxu0 %v805
        %1189 = vmatpush.bf16.msra.mxu0 %v803
        %1190 = vmatmul.bf16.gmra.mxu0 %v1167
        %v1191 = vpop.f32.mrf.mxu0
        %v1192 = vadd.f32 0.0, %v1191
        %v1193 = vpop.f32.mrf.mxu0
        %1194 = vdwg.mxu0
        %v1195 = vpack.c.bf16 %v1155, %v1155
        %v1197 = vrot.slane %v1195, 2
        %v1199 = vsel %vm688, %v1197, 0
        %1201 = vmatpush.bf16.msra.mxu0 0
        %1202 = vmatpush.bf16.msra.mxu0 0
        %1203 = vmatpush.bf16.msra.mxu0 0
        %1204 = vmatpush.bf16.msra.mxu0 0
        %1205 = vmatpush.bf16.msra.mxu0 %v877
        %1206 = vmatpush.bf16.msra.mxu0 %v875
        %1207 = vmatpush.bf16.msra.mxu0 %v873
        %1208 = vmatpush.bf16.msra.mxu0 %v871
        %1209 = vmatmul.bf16.gmra.mxu0 %v1199
        %v1210 = vpop.f32.mrf.mxu0
        %v1211 = vadd.f32 0.0, %v1210
        %v1212 = vpop.f32.mrf.mxu0
        %1213 = vdwg.mxu0
        %1214 = vmatpush.bf16.msra.mxu0 0
        %1215 = vmatpush.bf16.msra.mxu0 0
        %1216 = vmatpush.bf16.msra.mxu0 0
        %1217 = vmatpush.bf16.msra.mxu0 0
        %1218 = vmatpush.bf16.msra.mxu0 %v878
        %1219 = vmatpush.bf16.msra.mxu0 %v876
        %1220 = vmatpush.bf16.msra.mxu0 %v874
        %1221 = vmatpush.bf16.msra.mxu0 %v872
        %1222 = vmatmul.bf16.gmra.mxu0 %v1199
        %v1223 = vpop.f32.mrf.mxu0
        %v1224 = vadd.f32 0.0, %v1223
        %v1225 = vpop.f32.mrf.mxu0
        %1226 = vdwg.mxu0
        %v1227 = vld [vmem:[#allocation2] sm:$0x30]
        %v1228 = vld [vmem:[#allocation2 + $0x8] sm:$0x30]
        %v1229 = vld [vmem:[#allocation3 + $0x10] sm:$0xc]
        %v1230 = vld [vmem:[#allocation3 + $0x18] sm:$0xc]
        %v1232 = vrot.slane %v1179, 4
        %v1234 = vadd.f32 %v1227, %v1232
        %v1235 = vxor.u32 %v1234, 2147483648
        %v1236 = vmul.f32 %v1235, 1.442695
        %v1237 = vpow.pop %v1236
        %v1238 = vadd.f32 %v1237, 1.0
        %v1239 = vrcp.pop %v1238
        %v1240 = vmul.f32 %v1238, %v1239
        %v1241 = vsub.f32 1.0, %v1240
        %v1242 = vmul.f32 %v1239, %v1241
        %v1243 = vadd.f32 %v1239, %v1242
        %vm1244 = vweird.f32 %v1238
        %vm1245 = vweird.f32 %v1239
        %vm1246 = vmor %vm1244, %vm1245
        %v1247 = vsel %vm1246, %v1239, %v1243
        %v1248 = vand.u32 2147483647, %v1238
        %vm1249 = vcmp.eq.f32.partialorder %v1248, 8.507059e+37
        %v1250 = vand.u32 %v1238, 2147483648
        %v1251 = vor.u32 1.1754944e-38, %v1250
        %v1252 = vsel %vm1249, %v1251, %v1247
        %v1253 = vmul.f32 1.0, %v1252
        %v1255 = vrot.slane %v1211, 6
        %v1257 = vadd.f32 %v1229, %v1255
        %v1258 = vxor.u32 %v1257, 2147483648
        %v1259 = vmul.f32 %v1258, 1.442695
        %v1260 = vpow.pop %v1259
        %v1261 = vadd.f32 %v1260, 1.0
        %v1262 = vrcp.pop %v1261
        %v1263 = vmul.f32 %v1261, %v1262
        %v1264 = vsub.f32 1.0, %v1263
        %v1265 = vmul.f32 %v1262, %v1264
        %v1266 = vadd.f32 %v1262, %v1265
        %vm1267 = vweird.f32 %v1261
        %vm1268 = vweird.f32 %v1262
        %vm1269 = vmor %vm1267, %vm1268
        %v1270 = vsel %vm1269, %v1262, %v1266
        %v1271 = vand.u32 2147483647, %v1261
        %vm1272 = vcmp.eq.f32.partialorder %v1271, 8.507059e+37
        %v1273 = vand.u32 %v1261, 2147483648
        %v1274 = vor.u32 1.1754944e-38, %v1273
        %v1275 = vsel %vm1272, %v1274, %v1270
        %v1276 = vmul.f32 1.0, %v1275
        %v1277 = vadd.f32 %v1192, %v772
        %v1279 = vrot.slane %v1277, 4
        %v1281 = vmul.f32 %v1253, %v1279
        %v1282 = vadd.f32 %v1228, %v1281
        %v1283 = vtanh.pop %v1282
        %v1284 = vadd.f32 %v1224, %v776
        %v1286 = vrot.slane %v1284, 6
        %v1288 = vmul.f32 %v1276, %v1286
        %v1289 = vadd.f32 %v1230, %v1288
        %v1290 = vtanh.pop %v1289
        %v1292 = vrot.slane %v1283, 2
        %v1294 = vsub.f32 %v1140, %v1292
        %v1296 = vrot.slane %v1294, 6
        %1297 = vrot.lane.b32.xlu0 %v1296, 64
        %v1298 = vpop.permute.xlu0 %1297
        %v1300 = vmul.f32 %v1253, %v1298
        %1302 = vrot.lane.b32.xlu0 %v1300, 64
        %v1303 = vpop.permute.xlu0 %1302
        %v1305 = vadd.f32 %v1283, %v1303
        %v1307 = vrot.slane %v1290, 6
        %v1309 = vsub.f32 %v1155, %v1307
        %v1311 = vrot.slane %v1309, 2
        %1312 = vrot.lane.b32.xlu0 %v1311, 64
        %v1313 = vpop.permute.xlu0 %1312
        %v1315 = vmul.f32 %v1276, %v1313
        %1317 = vrot.lane.b32.xlu0 %v1315, 64
        %v1318 = vpop.permute.xlu0 %1317
        %v1320 = vadd.f32 %v1290, %v1318
        %v1322 = vrot.slane %v1320, 6
        %1323 = vrot.lane.b32.xlu0 %v1322, 64
        %v1324 = vpop.permute.xlu0 %1323
        %v1326 = vsel %vm688, %v1305, %v1324
        %1327 = vst [vmem:[%s609] sm:$0x30] %v1326
        %v1328 = vpack.c.bf16 %v1305, %v1305
        %v1330 = vrot.slane %v1328, 2
        %v1332 = vsel %vm688, %v1330, 0
        %1334 = vmatpush.bf16.msra.mxu0 0
        %1335 = vmatpush.bf16.msra.mxu0 0
        %1336 = vmatpush.bf16.msra.mxu0 0
        %1337 = vmatpush.bf16.msra.mxu0 0
        %1338 = vmatpush.bf16.msra.mxu0 %v808
        %1339 = vmatpush.bf16.msra.mxu0 %v806
        %1340 = vmatpush.bf16.msra.mxu0 %v804
        %1341 = vmatpush.bf16.msra.mxu0 %v802
        %1342 = vmatmul.bf16.gmra.mxu0 %v1332
        %v1343 = vpop.f32.mrf.mxu0
        %v1344 = vadd.f32 0.0, %v1343
        %v1345 = vpop.f32.mrf.mxu0
        %1346 = vdwg.mxu0
        %1347 = vmatpush.bf16.msra.mxu0 0
        %1348 = vmatpush.bf16.msra.mxu0 0
        %1349 = vmatpush.bf16.msra.mxu0 0
        %1350 = vmatpush.bf16.msra.mxu0 0
        %1351 = vmatpush.bf16.msra.mxu0 %v809
        %1352 = vmatpush.bf16.msra.mxu0 %v807
        %1353 = vmatpush.bf16.msra.mxu0 %v805
        %1354 = vmatpush.bf16.msra.mxu0 %v803
        %1355 = vmatmul.bf16.gmra.mxu0 %v1332
        %v1356 = vpop.f32.mrf.mxu0
        %v1357 = vadd.f32 0.0, %v1356
        %v1358 = vpop.f32.mrf.mxu0
        %1359 = vdwg.mxu0
        %v1360 = vpack.c.bf16 %v1320, %v1320
        %v1362 = vrot.slane %v1360, 1
        %v1364 = vsel %vm688, %v1362, 0
        %1366 = vmatpush.bf16.msra.mxu0 0
        %1367 = vmatpush.bf16.msra.mxu0 0
        %1368 = vmatpush.bf16.msra.mxu0 0
        %1369 = vmatpush.bf16.msra.mxu0 0
        %1370 = vmatpush.bf16.msra.mxu0 %v877
        %1371 = vmatpush.bf16.msra.mxu0 %v875
        %1372 = vmatpush.bf16.msra.mxu0 %v873
        %1373 = vmatpush.bf16.msra.mxu0 %v871
        %1374 = vmatmul.bf16.gmra.mxu0 %v1364
        %v1375 = vpop.f32.mrf.mxu0
        %v1376 = vadd.f32 0.0, %v1375
        %v1377 = vpop.f32.mrf.mxu0
        %1378 = vdwg.mxu0
        %1379 = vmatpush.bf16.msra.mxu0 0
        %1380 = vmatpush.bf16.msra.mxu0 0
        %1381 = vmatpush.bf16.msra.mxu0 0
        %1382 = vmatpush.bf16.msra.mxu0 0
        %1383 = vmatpush.bf16.msra.mxu0 %v878
        %1384 = vmatpush.bf16.msra.mxu0 %v876
        %1385 = vmatpush.bf16.msra.mxu0 %v874
        %1386 = vmatpush.bf16.msra.mxu0 %v872
        %1387 = vmatmul.bf16.gmra.mxu0 %v1364
        %v1388 = vpop.f32.mrf.mxu0
        %v1389 = vadd.f32 0.0, %v1388
        %v1390 = vpop.f32.mrf.mxu0
        %1391 = vdwg.mxu0
        %v1392 = vld [vmem:[#allocation2] sm:$0xc0]
        %v1393 = vld [vmem:[#allocation2 + $0x8] sm:$0xc0]
        %v1394 = vld [vmem:[#allocation3 + $0x10] sm:$0x3]
        %v1395 = vld [vmem:[#allocation3 + $0x18] sm:$0x3]
        %v1397 = vrot.slane %v1344, 2
        %v1399 = vadd.f32 %v1392, %v1397
        %v1400 = vxor.u32 %v1399, 2147483648
        %v1401 = vmul.f32 %v1400, 1.442695
        %v1402 = vpow.pop %v1401
        %v1403 = vadd.f32 %v1402, 1.0
        %v1404 = vrcp.pop %v1403
        %v1405 = vmul.f32 %v1403, %v1404
        %v1406 = vsub.f32 1.0, %v1405
        %v1407 = vmul.f32 %v1404, %v1406
        %v1408 = vadd.f32 %v1404, %v1407
        %vm1409 = vweird.f32 %v1403
        %vm1410 = vweird.f32 %v1404
        %vm1411 = vmor %vm1409, %vm1410
        %v1412 = vsel %vm1411, %v1404, %v1408
        %v1413 = vand.u32 2147483647, %v1403
        %vm1414 = vcmp.eq.f32.partialorder %v1413, 8.507059e+37
        %v1415 = vand.u32 %v1403, 2147483648
        %v1416 = vor.u32 1.1754944e-38, %v1415
        %v1417 = vsel %vm1414, %v1416, %v1412
        %v1418 = vmul.f32 1.0, %v1417
        %v1419 = vadd.f32 %v1394, %v1376
        %v1420 = vxor.u32 %v1419, 2147483648
        %v1421 = vmul.f32 %v1420, 1.442695
        %v1422 = vpow.pop %v1421
        %v1423 = vadd.f32 %v1422, 1.0
        %v1424 = vrcp.pop %v1423
        %v1425 = vmul.f32 %v1423, %v1424
        %v1426 = vsub.f32 1.0, %v1425
        %v1427 = vmul.f32 %v1424, %v1426
        %v1428 = vadd.f32 %v1424, %v1427
        %vm1429 = vweird.f32 %v1423
        %vm1430 = vweird.f32 %v1424
        %vm1431 = vmor %vm1429, %vm1430
        %v1432 = vsel %vm1431, %v1424, %v1428
        %v1433 = vand.u32 2147483647, %v1423
        %vm1434 = vcmp.eq.f32.partialorder %v1433, 8.507059e+37
        %v1435 = vand.u32 %v1423, 2147483648
        %v1436 = vor.u32 1.1754944e-38, %v1435
        %v1437 = vsel %vm1434, %v1436, %v1432
        %v1438 = vmul.f32 1.0, %v1437
        %v1439 = vadd.f32 %v1357, %v772
        %v1441 = vrot.slane %v1439, 2
        %v1443 = vmul.f32 %v1418, %v1441
        %v1444 = vadd.f32 %v1393, %v1443
        %v1445 = vtanh.pop %v1444
        %v1446 = vadd.f32 %v1389, %v776
        %v1447 = vmul.f32 %v1438, %v1446
        %v1448 = vadd.f32 %v1395, %v1447
        %v1449 = vtanh.pop %v1448
        %v1451 = vrot.slane %v1445, 2
        %v1453 = vsub.f32 %v1305, %v1451
        %v1455 = vrot.slane %v1453, 6
        %1456 = vrot.lane.b32.xlu0 %v1455, 64
        %v1457 = vpop.permute.xlu0 %1456
        %v1459 = vmul.f32 %v1418, %v1457
        %1461 = vrot.lane.b32.xlu0 %v1459, 64
        %v1462 = vpop.permute.xlu0 %1461
        %v1464 = vadd.f32 %v1445, %v1462
        %v1466 = vrot.slane %v1449, 6
        %v1468 = vsub.f32 %v1320, %v1466
        %v1470 = vrot.slane %v1468, 2
        %1471 = vrot.lane.b32.xlu0 %v1470, 64
        %v1472 = vpop.permute.xlu0 %1471
        %v1474 = vmul.f32 %v1438, %v1472
        %1476 = vrot.lane.b32.xlu0 %v1474, 64
        %v1477 = vpop.permute.xlu0 %1476
        %v1479 = vadd.f32 %v1449, %v1477
        %v1481 = vrot.slane %v1479, 2
        %1482 = vrot.lane.b32.xlu0 %v1481, 64
        %v1483 = vpop.permute.xlu0 %1482
        %v1485 = vsel %vm688, %v1464, %v1483
        %1486 = vst [vmem:[%s609] sm:$0xc0] %v1485
        %v1487 = vpack.c.bf16 %v1464, %v1464
        %v1489 = vrot.slane %v1487, 3
        %v1491 = vsel %vm688, %v1489, 0
        %1493 = vmatpush.bf16.msra.mxu0 0
        %1494 = vmatpush.bf16.msra.mxu0 0
        %1495 = vmatpush.bf16.msra.mxu0 0
        %1496 = vmatpush.bf16.msra.mxu0 0
        %1497 = vmatpush.bf16.msra.mxu0 %v808
        %1498 = vmatpush.bf16.msra.mxu0 %v806
        %1499 = vmatpush.bf16.msra.mxu0 %v804
        %1500 = vmatpush.bf16.msra.mxu0 %v802
        %1501 = vmatmul.bf16.gmra.mxu0 %v1491
        %v1502 = vpop.f32.mrf.mxu0
        %v1503 = vadd.f32 0.0, %v1502
        %v1504 = vpop.f32.mrf.mxu0
        %1505 = vdwg.mxu0
        %1506 = vmatpush.bf16.msra.mxu0 0
        %1507 = vmatpush.bf16.msra.mxu0 0
        %1508 = vmatpush.bf16.msra.mxu0 0
        %1509 = vmatpush.bf16.msra.mxu0 0
        %1510 = vmatpush.bf16.msra.mxu0 %v809
        %1511 = vmatpush.bf16.msra.mxu0 %v807
        %1512 = vmatpush.bf16.msra.mxu0 %v805
        %1513 = vmatpush.bf16.msra.mxu0 %v803
        %1514 = vmatmul.bf16.gmra.mxu0 %v1491
        %v1515 = vpop.f32.mrf.mxu0
        %v1516 = vadd.f32 0.0, %v1515
        %v1517 = vpop.f32.mrf.mxu0
        %1518 = vdwg.mxu0
        %v1519 = vpack.c.bf16 %v1479, %v1479
        %v1521 = vsel %vm688, %v1519, 0
        %1523 = vmatpush.bf16.msra.mxu0 0
        %1524 = vmatpush.bf16.msra.mxu0 0
        %1525 = vmatpush.bf16.msra.mxu0 0
        %1526 = vmatpush.bf16.msra.mxu0 0
        %1527 = vmatpush.bf16.msra.mxu0 %v877
        %1528 = vmatpush.bf16.msra.mxu0 %v875
        %1529 = vmatpush.bf16.msra.mxu0 %v873
        %1530 = vmatpush.bf16.msra.mxu0 %v871
        %1531 = vmatmul.bf16.gmra.mxu0 %v1521
        %v1532 = vpop.f32.mrf.mxu0
        %v1533 = vadd.f32 0.0, %v1532
        %v1534 = vpop.f32.mrf.mxu0
        %1535 = vdwg.mxu0
        %1536 = vmatpush.bf16.msra.mxu0 0
        %1537 = vmatpush.bf16.msra.mxu0 0
        %1538 = vmatpush.bf16.msra.mxu0 0
        %1539 = vmatpush.bf16.msra.mxu0 0
        %1540 = vmatpush.bf16.msra.mxu0 %v878
        %1541 = vmatpush.bf16.msra.mxu0 %v876
        %1542 = vmatpush.bf16.msra.mxu0 %v874
        %1543 = vmatpush.bf16.msra.mxu0 %v872
        %1544 = vmatmul.bf16.gmra.mxu0 %v1521
        %v1545 = vpop.f32.mrf.mxu0
        %v1546 = vadd.f32 0.0, %v1545
        %v1547 = vpop.f32.mrf.mxu0
        %1548 = vdwg.mxu0
        %v1549 = vld [vmem:[#allocation2 + $0x10] sm:$0x3]
        %v1550 = vld [vmem:[#allocation2 + $0x18] sm:$0x3]
        %v1551 = vld [vmem:[#allocation3] sm:$0xc0]
        %v1552 = vld [vmem:[#allocation3 + $0x8] sm:$0xc0]
        %v1553 = vadd.f32 %v1549, %v1503
        %v1554 = vxor.u32 %v1553, 2147483648
        %v1555 = vmul.f32 %v1554, 1.442695
        %v1556 = vpow.pop %v1555
        %v1557 = vadd.f32 %v1556, 1.0
        %v1558 = vrcp.pop %v1557
        %v1559 = vmul.f32 %v1557, %v1558
        %v1560 = vsub.f32 1.0, %v1559
        %v1561 = vmul.f32 %v1558, %v1560
        %v1562 = vadd.f32 %v1558, %v1561
        %vm1563 = vweird.f32 %v1557
        %vm1564 = vweird.f32 %v1558
        %vm1565 = vmor %vm1563, %vm1564
        %v1566 = vsel %vm1565, %v1558, %v1562
        %v1567 = vand.u32 2147483647, %v1557
        %vm1568 = vcmp.eq.f32.partialorder %v1567, 8.507059e+37
        %v1569 = vand.u32 %v1557, 2147483648
        %v1570 = vor.u32 1.1754944e-38, %v1569
        %v1571 = vsel %vm1568, %v1570, %v1566
        %v1572 = vmul.f32 1.0, %v1571
        %v1574 = vrot.slane %v1533, 2
        %v1576 = vadd.f32 %v1551, %v1574
        %v1577 = vxor.u32 %v1576, 2147483648
        %v1578 = vmul.f32 %v1577, 1.442695
        %v1579 = vpow.pop %v1578
        %v1580 = vadd.f32 %v1579, 1.0
        %v1581 = vrcp.pop %v1580
        %v1582 = vmul.f32 %v1580, %v1581
        %v1583 = vsub.f32 1.0, %v1582
        %v1584 = vmul.f32 %v1581, %v1583
        %v1585 = vadd.f32 %v1581, %v1584
        %vm1586 = vweird.f32 %v1580
        %vm1587 = vweird.f32 %v1581
        %vm1588 = vmor %vm1586, %vm1587
        %v1589 = vsel %vm1588, %v1581, %v1585
        %v1590 = vand.u32 2147483647, %v1580
        %vm1591 = vcmp.eq.f32.partialorder %v1590, 8.507059e+37
        %v1592 = vand.u32 %v1580, 2147483648
        %v1593 = vor.u32 1.1754944e-38, %v1592
        %v1594 = vsel %vm1591, %v1593, %v1589
        %v1595 = vmul.f32 1.0, %v1594
        %v1596 = vadd.f32 %v1516, %v772
        %v1597 = vmul.f32 %v1572, %v1596
        %v1598 = vadd.f32 %v1550, %v1597
        %v1599 = vtanh.pop %v1598
        %v1600 = vadd.f32 %v1546, %v776
        %v1602 = vrot.slane %v1600, 2
        %v1604 = vmul.f32 %v1595, %v1602
        %v1605 = vadd.f32 %v1552, %v1604
        %v1606 = vtanh.pop %v1605
        %v1608 = vrot.slane %v1599, 2
        %v1610 = vsub.f32 %v1464, %v1608
        %v1612 = vrot.slane %v1610, 6
        %1613 = vrot.lane.b32.xlu0 %v1612, 64
        %v1614 = vpop.permute.xlu0 %1613
        %v1616 = vmul.f32 %v1572, %v1614
        %1618 = vrot.lane.b32.xlu0 %v1616, 64
        %v1619 = vpop.permute.xlu0 %1618
        %v1621 = vadd.f32 %v1599, %v1619
        %v1623 = vrot.slane %v1606, 6
        %v1625 = vsub.f32 %v1479, %v1623
        %v1627 = vrot.slane %v1625, 2
        %1628 = vrot.lane.b32.xlu0 %v1627, 64
        %v1629 = vpop.permute.xlu0 %1628
        %v1631 = vmul.f32 %v1595, %v1629
        %1633 = vrot.lane.b32.xlu0 %v1631, 64
        %v1634 = vpop.permute.xlu0 %1633
        %v1636 = vadd.f32 %v1606, %v1634
        %v1638 = vrot.slane %v1636, 6
        %1639 = vrot.lane.b32.xlu0 %v1638, 64
        %v1640 = vpop.permute.xlu0 %1639
        %v1642 = vsel %vm688, %v1621, %v1640
        %1643 = vst [vmem:[%s609 + $0x8] sm:$0x3] %v1642
        %v1644 = vpack.c.bf16 %v1621, %v1621
        %v1646 = vsel %vm688, %v1644, 0
        %1648 = vmatpush.bf16.msra.mxu0 0
        %1649 = vmatpush.bf16.msra.mxu0 0
        %1650 = vmatpush.bf16.msra.mxu0 0
        %1651 = vmatpush.bf16.msra.mxu0 0
        %1652 = vmatpush.bf16.msra.mxu0 %v808
        %1653 = vmatpush.bf16.msra.mxu0 %v806
        %1654 = vmatpush.bf16.msra.mxu0 %v804
        %1655 = vmatpush.bf16.msra.mxu0 %v802
        %1656 = vmatmul.bf16.gmra.mxu0 %v1646
        %v1657 = vpop.f32.mrf.mxu0
        %v1658 = vadd.f32 0.0, %v1657
        %v1659 = vpop.f32.mrf.mxu0
        %1660 = vdwg.mxu0
        %1661 = vmatpush.bf16.msra.mxu0 0
        %1662 = vmatpush.bf16.msra.mxu0 0
        %1663 = vmatpush.bf16.msra.mxu0 0
        %1664 = vmatpush.bf16.msra.mxu0 0
        %1665 = vmatpush.bf16.msra.mxu0 %v809
        %1666 = vmatpush.bf16.msra.mxu0 %v807
        %1667 = vmatpush.bf16.msra.mxu0 %v805
        %1668 = vmatpush.bf16.msra.mxu0 %v803
        %1669 = vmatmul.bf16.gmra.mxu0 %v1646
        %v1670 = vpop.f32.mrf.mxu0
        %v1671 = vadd.f32 0.0, %v1670
        %v1672 = vpop.f32.mrf.mxu0
        %1673 = vdwg.mxu0
        %v1674 = vpack.c.bf16 %v1636, %v1636
        %v1676 = vrot.slane %v1674, 3
        %v1678 = vsel %vm688, %v1676, 0
        %1680 = vmatpush.bf16.msra.mxu0 0
        %1681 = vmatpush.bf16.msra.mxu0 0
        %1682 = vmatpush.bf16.msra.mxu0 0
        %1683 = vmatpush.bf16.msra.mxu0 0
        %1684 = vmatpush.bf16.msra.mxu0 %v877
        %1685 = vmatpush.bf16.msra.mxu0 %v875
        %1686 = vmatpush.bf16.msra.mxu0 %v873
        %1687 = vmatpush.bf16.msra.mxu0 %v871
        %1688 = vmatmul.bf16.gmra.mxu0 %v1678
        %v1689 = vpop.f32.mrf.mxu0
        %v1690 = vadd.f32 0.0, %v1689
        %v1691 = vpop.f32.mrf.mxu0
        %1692 = vdwg.mxu0
        %1693 = vmatpush.bf16.msra.mxu0 0
        %1694 = vmatpush.bf16.msra.mxu0 0
        %1695 = vmatpush.bf16.msra.mxu0 0
        %1696 = vmatpush.bf16.msra.mxu0 0
        %1697 = vmatpush.bf16.msra.mxu0 %v878
        %1698 = vmatpush.bf16.msra.mxu0 %v876
        %1699 = vmatpush.bf16.msra.mxu0 %v874
        %1700 = vmatpush.bf16.msra.mxu0 %v872
        %1701 = vmatmul.bf16.gmra.mxu0 %v1678
        %v1702 = vpop.f32.mrf.mxu0
        %v1703 = vadd.f32 0.0, %v1702
        %v1704 = vpop.f32.mrf.mxu0
        %1705 = vdwg.mxu0
        %v1706 = vld [vmem:[#allocation2 + $0x10] sm:$0xc]
        %v1707 = vld [vmem:[#allocation2 + $0x18] sm:$0xc]
        %v1708 = vld [vmem:[#allocation3] sm:$0x30]
        %v1709 = vld [vmem:[#allocation3 + $0x8] sm:$0x30]
        %v1711 = vrot.slane %v1658, 6
        %v1713 = vadd.f32 %v1706, %v1711
        %v1714 = vxor.u32 %v1713, 2147483648
        %v1715 = vmul.f32 %v1714, 1.442695
        %v1716 = vpow.pop %v1715
        %v1717 = vadd.f32 %v1716, 1.0
        %v1718 = vrcp.pop %v1717
        %v1719 = vmul.f32 %v1717, %v1718
        %v1720 = vsub.f32 1.0, %v1719
        %v1721 = vmul.f32 %v1718, %v1720
        %v1722 = vadd.f32 %v1718, %v1721
        %vm1723 = vweird.f32 %v1717
        %vm1724 = vweird.f32 %v1718
        %vm1725 = vmor %vm1723, %vm1724
        %v1726 = vsel %vm1725, %v1718, %v1722
        %v1727 = vand.u32 2147483647, %v1717
        %vm1728 = vcmp.eq.f32.partialorder %v1727, 8.507059e+37
        %v1729 = vand.u32 %v1717, 2147483648
        %v1730 = vor.u32 1.1754944e-38, %v1729
        %v1731 = vsel %vm1728, %v1730, %v1726
        %v1732 = vmul.f32 1.0, %v1731
        %v1734 = vrot.slane %v1690, 4
        %v1736 = vadd.f32 %v1708, %v1734
        %v1737 = vxor.u32 %v1736, 2147483648
        %v1738 = vmul.f32 %v1737, 1.442695
        %v1739 = vpow.pop %v1738
        %v1740 = vadd.f32 %v1739, 1.0
        %v1741 = vrcp.pop %v1740
        %v1742 = vmul.f32 %v1740, %v1741
        %v1743 = vsub.f32 1.0, %v1742
        %v1744 = vmul.f32 %v1741, %v1743
        %v1745 = vadd.f32 %v1741, %v1744
        %vm1746 = vweird.f32 %v1740
        %vm1747 = vweird.f32 %v1741
        %vm1748 = vmor %vm1746, %vm1747
        %v1749 = vsel %vm1748, %v1741, %v1745
        %v1750 = vand.u32 2147483647, %v1740
        %vm1751 = vcmp.eq.f32.partialorder %v1750, 8.507059e+37
        %v1752 = vand.u32 %v1740, 2147483648
        %v1753 = vor.u32 1.1754944e-38, %v1752
        %v1754 = vsel %vm1751, %v1753, %v1749
        %v1755 = vmul.f32 1.0, %v1754
        %v1756 = vadd.f32 %v1671, %v772
        %v1758 = vrot.slane %v1756, 6
        %v1760 = vmul.f32 %v1732, %v1758
        %v1761 = vadd.f32 %v1707, %v1760
        %v1762 = vtanh.pop %v1761
        %v1763 = vadd.f32 %v1703, %v776
        %v1765 = vrot.slane %v1763, 4
        %v1767 = vmul.f32 %v1755, %v1765
        %v1768 = vadd.f32 %v1709, %v1767
        %v1769 = vtanh.pop %v1768
        %v1771 = vrot.slane %v1762, 2
        %v1773 = vsub.f32 %v1621, %v1771
        %v1775 = vrot.slane %v1773, 6
        %1776 = vrot.lane.b32.xlu0 %v1775, 64
        %v1777 = vpop.permute.xlu0 %1776
        %v1779 = vmul.f32 %v1732, %v1777
        %1781 = vrot.lane.b32.xlu0 %v1779, 64
        %v1782 = vpop.permute.xlu0 %1781
        %v1784 = vadd.f32 %v1762, %v1782
        %v1786 = vrot.slane %v1769, 6
        %v1788 = vsub.f32 %v1636, %v1786
        %v1790 = vrot.slane %v1788, 2
        %1791 = vrot.lane.b32.xlu0 %v1790, 64
        %v1792 = vpop.permute.xlu0 %1791
        %v1794 = vmul.f32 %v1755, %v1792
        %1796 = vrot.lane.b32.xlu0 %v1794, 64
        %v1797 = vpop.permute.xlu0 %1796
        %v1799 = vadd.f32 %v1769, %v1797
        %v1801 = vrot.slane %v1799, 2
        %1802 = vrot.lane.b32.xlu0 %v1801, 64
        %v1803 = vpop.permute.xlu0 %1802
        %v1805 = vsel %vm688, %v1784, %v1803
        %1806 = vst [vmem:[%s609 + $0x8] sm:$0xc] %v1805
        %v1807 = vpack.c.bf16 %v1784, %v1784
        %v1809 = vrot.slane %v1807, 1
        %v1811 = vsel %vm688, %v1809, 0
        %1813 = vmatpush.bf16.msra.mxu0 0
        %1814 = vmatpush.bf16.msra.mxu0 0
        %1815 = vmatpush.bf16.msra.mxu0 0
        %1816 = vmatpush.bf16.msra.mxu0 0
        %1817 = vmatpush.bf16.msra.mxu0 %v808
        %1818 = vmatpush.bf16.msra.mxu0 %v806
        %1819 = vmatpush.bf16.msra.mxu0 %v804
        %1820 = vmatpush.bf16.msra.mxu0 %v802
        %1821 = vmatmul.bf16.gmra.mxu0 %v1811
        %v1822 = vpop.f32.mrf.mxu0
        %v1823 = vadd.f32 0.0, %v1822
        %v1824 = vpop.f32.mrf.mxu0
        %1825 = vdwg.mxu0
        %1826 = vmatpush.bf16.msra.mxu0 0
        %1827 = vmatpush.bf16.msra.mxu0 0
        %1828 = vmatpush.bf16.msra.mxu0 0
        %1829 = vmatpush.bf16.msra.mxu0 0
        %1830 = vmatpush.bf16.msra.mxu0 %v809
        %1831 = vmatpush.bf16.msra.mxu0 %v807
        %1832 = vmatpush.bf16.msra.mxu0 %v805
        %1833 = vmatpush.bf16.msra.mxu0 %v803
        %1834 = vmatmul.bf16.gmra.mxu0 %v1811
        %v1835 = vpop.f32.mrf.mxu0
        %v1836 = vadd.f32 0.0, %v1835
        %v1837 = vpop.f32.mrf.mxu0
        %1838 = vdwg.mxu0
        %v1839 = vpack.c.bf16 %v1799, %v1799
        %v1841 = vrot.slane %v1839, 2
        %v1843 = vsel %vm688, %v1841, 0
        %1845 = vmatpush.bf16.msra.mxu0 0
        %1846 = vmatpush.bf16.msra.mxu0 0
        %1847 = vmatpush.bf16.msra.mxu0 0
        %1848 = vmatpush.bf16.msra.mxu0 0
        %1849 = vmatpush.bf16.msra.mxu0 %v877
        %1850 = vmatpush.bf16.msra.mxu0 %v875
        %1851 = vmatpush.bf16.msra.mxu0 %v873
        %1852 = vmatpush.bf16.msra.mxu0 %v871
        %1853 = vmatmul.bf16.gmra.mxu0 %v1843
        %v1854 = vpop.f32.mrf.mxu0
        %v1855 = vadd.f32 0.0, %v1854
        %v1856 = vpop.f32.mrf.mxu0
        %1857 = vdwg.mxu0
        %1858 = vmatpush.bf16.msra.mxu0 0
        %1859 = vmatpush.bf16.msra.mxu0 0
        %1860 = vmatpush.bf16.msra.mxu0 0
        %1861 = vmatpush.bf16.msra.mxu0 0
        %1862 = vmatpush.bf16.msra.mxu0 %v878
        %1863 = vmatpush.bf16.msra.mxu0 %v876
        %1864 = vmatpush.bf16.msra.mxu0 %v874
        %1865 = vmatpush.bf16.msra.mxu0 %v872
        %1866 = vmatmul.bf16.gmra.mxu0 %v1843
        %v1867 = vpop.f32.mrf.mxu0
        %v1868 = vadd.f32 0.0, %v1867
        %v1869 = vpop.f32.mrf.mxu0
        %1870 = vdwg.mxu0
        %v1871 = vld [vmem:[#allocation2 + $0x10] sm:$0x30]
        %v1872 = vld [vmem:[#allocation2 + $0x18] sm:$0x30]
        %v1873 = vld [vmem:[#allocation3] sm:$0xc]
        %v1874 = vld [vmem:[#allocation3 + $0x8] sm:$0xc]
        %v1876 = vrot.slane %v1823, 4
        %v1878 = vadd.f32 %v1871, %v1876
        %v1879 = vxor.u32 %v1878, 2147483648
        %v1880 = vmul.f32 %v1879, 1.442695
        %v1881 = vpow.pop %v1880
        %v1882 = vadd.f32 %v1881, 1.0
        %v1883 = vrcp.pop %v1882
        %v1884 = vmul.f32 %v1882, %v1883
        %v1885 = vsub.f32 1.0, %v1884
        %v1886 = vmul.f32 %v1883, %v1885
        %v1887 = vadd.f32 %v1883, %v1886
        %vm1888 = vweird.f32 %v1882
        %vm1889 = vweird.f32 %v1883
        %vm1890 = vmor %vm1888, %vm1889
        %v1891 = vsel %vm1890, %v1883, %v1887
        %v1892 = vand.u32 2147483647, %v1882
        %vm1893 = vcmp.eq.f32.partialorder %v1892, 8.507059e+37
        %v1894 = vand.u32 %v1882, 2147483648
        %v1895 = vor.u32 1.1754944e-38, %v1894
        %v1896 = vsel %vm1893, %v1895, %v1891
        %v1897 = vmul.f32 1.0, %v1896
        %v1899 = vrot.slane %v1855, 6
        %v1901 = vadd.f32 %v1873, %v1899
        %v1902 = vxor.u32 %v1901, 2147483648
        %v1903 = vmul.f32 %v1902, 1.442695
        %v1904 = vpow.pop %v1903
        %v1905 = vadd.f32 %v1904, 1.0
        %v1906 = vrcp.pop %v1905
        %v1907 = vmul.f32 %v1905, %v1906
        %v1908 = vsub.f32 1.0, %v1907
        %v1909 = vmul.f32 %v1906, %v1908
        %v1910 = vadd.f32 %v1906, %v1909
        %vm1911 = vweird.f32 %v1905
        %vm1912 = vweird.f32 %v1906
        %vm1913 = vmor %vm1911, %vm1912
        %v1914 = vsel %vm1913, %v1906, %v1910
        %v1915 = vand.u32 2147483647, %v1905
        %vm1916 = vcmp.eq.f32.partialorder %v1915, 8.507059e+37
        %v1917 = vand.u32 %v1905, 2147483648
        %v1918 = vor.u32 1.1754944e-38, %v1917
        %v1919 = vsel %vm1916, %v1918, %v1914
        %v1920 = vmul.f32 1.0, %v1919
        %v1921 = vadd.f32 %v1836, %v772
        %v1923 = vrot.slane %v1921, 4
        %v1925 = vmul.f32 %v1897, %v1923
        %v1926 = vadd.f32 %v1872, %v1925
        %v1927 = vtanh.pop %v1926
        %v1928 = vadd.f32 %v1868, %v776
        %v1930 = vrot.slane %v1928, 6
        %v1932 = vmul.f32 %v1920, %v1930
        %v1933 = vadd.f32 %v1874, %v1932
        %v1934 = vtanh.pop %v1933
        %v1936 = vrot.slane %v1927, 2
        %v1938 = vsub.f32 %v1784, %v1936
        %v1940 = vrot.slane %v1938, 6
        %1941 = vrot.lane.b32.xlu0 %v1940, 64
        %v1942 = vpop.permute.xlu0 %1941
        %v1944 = vmul.f32 %v1897, %v1942
        %1946 = vrot.lane.b32.xlu0 %v1944, 64
        %v1947 = vpop.permute.xlu0 %1946
        %v1949 = vadd.f32 %v1927, %v1947
        %v1951 = vrot.slane %v1934, 6
        %v1953 = vsub.f32 %v1799, %v1951
        %v1955 = vrot.slane %v1953, 2
        %1956 = vrot.lane.b32.xlu0 %v1955, 64
        %v1957 = vpop.permute.xlu0 %1956
        %v1959 = vmul.f32 %v1920, %v1957
        %1961 = vrot.lane.b32.xlu0 %v1959, 64
        %v1962 = vpop.permute.xlu0 %1961
        %v1964 = vadd.f32 %v1934, %v1962
        %v1966 = vrot.slane %v1964, 6
        %1967 = vrot.lane.b32.xlu0 %v1966, 64
        %v1968 = vpop.permute.xlu0 %1967
        %v1970 = vsel %vm688, %v1949, %v1968
        %1971 = vst [vmem:[%s609 + $0x8] sm:$0x30] %v1970
        %v1972 = vpack.c.bf16 %v1949, %v1949
        %v1974 = vrot.slane %v1972, 2
        %v1976 = vsel %vm688, %v1974, 0
        %1978 = vmatpush.bf16.msra.mxu0 0
        %1979 = vmatpush.bf16.msra.mxu0 0
        %1980 = vmatpush.bf16.msra.mxu0 0
        %1981 = vmatpush.bf16.msra.mxu0 0
        %1982 = vmatpush.bf16.msra.mxu0 %v808
        %1983 = vmatpush.bf16.msra.mxu0 %v806
        %1984 = vmatpush.bf16.msra.mxu0 %v804
        %1985 = vmatpush.bf16.msra.mxu0 %v802
        %1986 = vmatmul.bf16.gmra.mxu0 %v1976
        %v1987 = vpop.f32.mrf.mxu0
        %v1988 = vadd.f32 0.0, %v1987
        %v1989 = vpop.f32.mrf.mxu0
        %1990 = vdwg.mxu0
        %1991 = vmatpush.bf16.msra.mxu0 0
        %1992 = vmatpush.bf16.msra.mxu0 0
        %1993 = vmatpush.bf16.msra.mxu0 0
        %1994 = vmatpush.bf16.msra.mxu0 0
        %1995 = vmatpush.bf16.msra.mxu0 %v809
        %1996 = vmatpush.bf16.msra.mxu0 %v807
        %1997 = vmatpush.bf16.msra.mxu0 %v805
        %1998 = vmatpush.bf16.msra.mxu0 %v803
        %1999 = vmatmul.bf16.gmra.mxu0 %v1976
        %v2000 = vpop.f32.mrf.mxu0
        %v2001 = vadd.f32 0.0, %v2000
        %v2002 = vpop.f32.mrf.mxu0
        %2003 = vdwg.mxu0
        %v2004 = vpack.c.bf16 %v1964, %v1964
        %v2006 = vrot.slane %v2004, 1
        %v2008 = vsel %vm688, %v2006, 0
        %2010 = vmatpush.bf16.msra.mxu0 0
        %2011 = vmatpush.bf16.msra.mxu0 0
        %2012 = vmatpush.bf16.msra.mxu0 0
        %2013 = vmatpush.bf16.msra.mxu0 0
        %2014 = vmatpush.bf16.msra.mxu0 %v877
        %2015 = vmatpush.bf16.msra.mxu0 %v875
        %2016 = vmatpush.bf16.msra.mxu0 %v873
        %2017 = vmatpush.bf16.msra.mxu0 %v871
        %2018 = vmatmul.bf16.gmra.mxu0 %v2008
        %v2019 = vpop.f32.mrf.mxu0
        %v2020 = vadd.f32 0.0, %v2019
        %v2021 = vpop.f32.mrf.mxu0
        %2022 = vdwg.mxu0
        %2023 = vmatpush.bf16.msra.mxu0 0
        %2024 = vmatpush.bf16.msra.mxu0 0
        %2025 = vmatpush.bf16.msra.mxu0 0
        %2026 = vmatpush.bf16.msra.mxu0 0
        %2027 = vmatpush.bf16.msra.mxu0 %v878
        %2028 = vmatpush.bf16.msra.mxu0 %v876
        %2029 = vmatpush.bf16.msra.mxu0 %v874
        %2030 = vmatpush.bf16.msra.mxu0 %v872
        %2031 = vmatmul.bf16.gmra.mxu0 %v2008
        %v2032 = vpop.f32.mrf.mxu0
        %v2033 = vadd.f32 0.0, %v2032
        %v2034 = vpop.f32.mrf.mxu0
        %2035 = vdwg.mxu0
        %v2036 = vld [vmem:[#allocation2 + $0x10] sm:$0xc0]
        %v2037 = vld [vmem:[#allocation2 + $0x18] sm:$0xc0]
        %v2038 = vld [vmem:[#allocation3] sm:$0x3]
        %v2039 = vld [vmem:[#allocation3 + $0x8] sm:$0x3]
        %v2041 = vrot.slane %v1988, 2
        %v2043 = vadd.f32 %v2036, %v2041
        %v2044 = vxor.u32 %v2043, 2147483648
        %v2045 = vmul.f32 %v2044, 1.442695
        %v2046 = vpow.pop %v2045
        %v2047 = vadd.f32 %v2046, 1.0
        %v2048 = vrcp.pop %v2047
        %v2049 = vmul.f32 %v2047, %v2048
        %v2050 = vsub.f32 1.0, %v2049
        %v2051 = vmul.f32 %v2048, %v2050
        %v2052 = vadd.f32 %v2048, %v2051
        %vm2053 = vweird.f32 %v2047
        %vm2054 = vweird.f32 %v2048
        %vm2055 = vmor %vm2053, %vm2054
        %v2056 = vsel %vm2055, %v2048, %v2052
        %v2057 = vand.u32 2147483647, %v2047
        %vm2058 = vcmp.eq.f32.partialorder %v2057, 8.507059e+37
        %v2059 = vand.u32 %v2047, 2147483648
        %v2060 = vor.u32 1.1754944e-38, %v2059
        %v2061 = vsel %vm2058, %v2060, %v2056
        %v2062 = vmul.f32 1.0, %v2061
        %v2063 = vadd.f32 %v2038, %v2020
        %v2064 = vxor.u32 %v2063, 2147483648
        %v2065 = vmul.f32 %v2064, 1.442695
        %v2066 = vpow.pop %v2065
        %v2067 = vadd.f32 %v2066, 1.0
        %v2068 = vrcp.pop %v2067
        %v2069 = vmul.f32 %v2067, %v2068
        %v2070 = vsub.f32 1.0, %v2069
        %v2071 = vmul.f32 %v2068, %v2070
        %v2072 = vadd.f32 %v2068, %v2071
        %vm2073 = vweird.f32 %v2067
        %vm2074 = vweird.f32 %v2068
        %vm2075 = vmor %vm2073, %vm2074
        %v2076 = vsel %vm2075, %v2068, %v2072
        %v2077 = vand.u32 2147483647, %v2067
        %vm2078 = vcmp.eq.f32.partialorder %v2077, 8.507059e+37
        %v2079 = vand.u32 %v2067, 2147483648
        %v2080 = vor.u32 1.1754944e-38, %v2079
        %v2081 = vsel %vm2078, %v2080, %v2076
        %v2082 = vmul.f32 1.0, %v2081
        %v2083 = vadd.f32 %v2001, %v772
        %v2085 = vrot.slane %v2083, 2
        %v2087 = vmul.f32 %v2062, %v2085
        %v2088 = vadd.f32 %v2037, %v2087
        %v2089 = vtanh.pop %v2088
        %v2090 = vadd.f32 %v2033, %v776
        %v2091 = vmul.f32 %v2082, %v2090
        %v2092 = vadd.f32 %v2039, %v2091
        %v2093 = vtanh.pop %v2092
        %v2095 = vrot.slane %v2089, 2
        %v2097 = vsub.f32 %v1949, %v2095
        %v2099 = vrot.slane %v2097, 6
        %2100 = vrot.lane.b32.xlu0 %v2099, 64
        %v2101 = vpop.permute.xlu0 %2100
        %v2103 = vmul.f32 %v2062, %v2101
        %2105 = vrot.lane.b32.xlu0 %v2103, 64
        %v2106 = vpop.permute.xlu0 %2105
        %v2108 = vadd.f32 %v2089, %v2106
        %v2110 = vrot.slane %v2093, 6
        %v2112 = vsub.f32 %v1964, %v2110
        %v2114 = vrot.slane %v2112, 2
        %2115 = vrot.lane.b32.xlu0 %v2114, 64
        %v2116 = vpop.permute.xlu0 %2115
        %v2118 = vmul.f32 %v2082, %v2116
        %2120 = vrot.lane.b32.xlu0 %v2118, 64
        %v2121 = vpop.permute.xlu0 %2120
        %v2123 = vadd.f32 %v2093, %v2121
        %v2125 = vrot.slane %v2123, 2
        %2126 = vrot.lane.b32.xlu0 %v2125, 64
        %v2127 = vpop.permute.xlu0 %2126
        %v2129 = vsel %vm688, %v2108, %v2127
        %2130 = vst [vmem:[%s609 + $0x8] sm:$0xc0] %v2129
        %s2131 = sand.u32 %s277, 1
        %s2132 = scalar_lea.sflag [#allocation6], %s2131
        %s2133 = sand.u32 %s277, 1
        %s2134 = smul.addr %s2133, 16
        %s2135 = scalar_lea.vmem [#allocation16], %s2134
        // Predicated region
        $region85: #{tpu_custom_call.1} parent=55 // pred_check
          %p2136 = pneg %p287
        $region86: #{tpu_custom_call.1} parent=55 // pred_check_branch
          %2138 = sbr.rel (%p2136) target = $region88
        $region87: #{tpu_custom_call.1} parent=55 // pred_region
          %2140 = vsyncadd %s2132, 0
          %s2141 = smul.addr %s35, 2
          %s2142 = smul.addr %s2141, 8
          %s2143 = scalar_lea.hbm %s9, %s2142
          %s2144 = sshll.u32 %s2135, 4
          %s2145 = int_to_ptr.vmem [resolvable:$true] %s2144
          %s2146 = sshll.u32 %s2143, 4
          %s2147 = int_to_ptr.hbm [resolvable:$true] %s2146
          %2152 = dma.vmem_to_hbm [thread:$0]  %s2145, 256, %s2147, %s2132, 128, 128, 8
        $region88: #{tpu_custom_call.1} parent=55 // pred_fallthru
          _
      $region56: #{tpu_custom_call.1} parent=5 // pred_fallthru
        _
      %p2153 = scmp.le.s32.totalorder 2, %s30
      // Predicated region
      $region89: #{tpu_custom_call.1} parent=5 // pred_check
        %p2154 = pneg %p2153
      $region90: #{tpu_custom_call.1} parent=5 // pred_check_branch
        %2156 = sbr.rel (%p2154) target = $region92
      $region91: #{tpu_custom_call.1} parent=5 // pred_region
        %s2157 = ssub.s32 %s30, 2
        // Predicated region
        $region93: #{tpu_custom_call.1} parent=91 // pred_check
          %p2158 = pneg %p293
        $region94: #{tpu_custom_call.1} parent=91 // pred_check_branch
          %2160 = sbr.rel (%p2158) target = $region96
        $region95: #{tpu_custom_call.1} parent=91 // pred_region
          %s2161 = sand.u32 %s278, 1
          %s2162 = scalar_lea.sflag [#allocation6], %s2161
          %s2163 = sand.u32 %s278, 1
          %s2164 = smul.addr %s2163, 16
          %s2165 = scalar_lea.vmem [#allocation16], %s2164
          %2167 = dma.done %s2162, 256
        $region96: #{tpu_custom_call.1} parent=91 // pred_fallthru
          _
      $region92: #{tpu_custom_call.1} parent=5 // pred_fallthru
        _
    $region6: #{tpu_custom_call.1} parent=1 // loop_footer
      %s34 = sadd.s32 1, %s30
    $region7: #{tpu_custom_call.1} parent=1 // loop_footer_branch
      %29 = sbr.rel target = $region3
    $region8: #{tpu_custom_call.1} parent=1 // loop_exit
      _
    %2168 = vsyncpa [#allocation5], 1
    %s2169 = scalar_lea.sflag [#allocation5], 1
    %2170 = vsyncpa %s2169, 1
    %2171 = vsyncpa [#allocation8], 1
    %s2172 = scalar_lea.sflag [#allocation8], 1
    %2173 = vsyncpa %s2172, 1
    %2174 = vsyncpa [#allocation11], 1
    %s2175 = scalar_lea.sflag [#allocation11], 1
    %2176 = vsyncpa %s2175, 1
    %2177 = vsyncpa [#allocation14], 1
    %s2178 = scalar_lea.sflag [#allocation14], 1
    %2179 = vsyncpa %s2178, 1
    %2180 = vsyncpa [#allocation6], 1
    %s2181 = scalar_lea.sflag [#allocation6], 1
    %2182 = vsyncpa %s2181, 1

</llo_original>
